<compile_context>
chip_gen: v6e
topology: v6e:2x2x1
jax: 0.10.0
libtpu: 0.0.40
codegen_flags: <defaults>
</compile_context>

<pallas_src>
import math
import numpy as np
import jax
import jax.numpy as jnp
from jax.experimental import pallas as pl
from jax.experimental.pallas import tpu as pltpu

# ----- small, module-consistent shapes -----
B, S, E = 2, 8, 32          # batch, sequence, embed_dim
N_HEADS = 4
HEAD_DIM = E // N_HEADS     # single_head_dim = 8
EXPANSION = 2
HIDDEN = EXPANSION * E      # 64
LN_EPS = 1e-5

GSB = N_HEADS * S           # 32  head-major rows per batch (ordered (head, seq))
NEG_INF = -1e30

# row layout of the packed parameter slab W_ALL (136, 64)
R_W1 = 0                    # rows [0, 32)   : w1            (E, HIDDEN)
R_W2T = E                   # rows [32, 64)  : w2^T          (E, HIDDEN)
R_WO = 2 * E                # rows [64, 96)  : wo            (E, E)      in lanes [0, E)
R_MASK = 3 * E              # rows [96, 128) : additive mask (GSB, GSB)  in lanes [0, GSB)
R_VEC = R_MASK + GSB        # rows [128, 136): packed 1-D params (bf1, bo, g1, be1, bf2, g2, be2)
W_ALL_ROWS = R_VEC + 8      # 136 (multiple of 8)


def transformer_block_kernel(qkv_ref, val_ref, wqkv_ref, wall_ref, out_ref):
    # ---- per-batch head-major activations: rows ordered (head, seq) ----
    q_hm = qkv_ref[0, 0:GSB, :]              # (32, 8)
    k_hm = qkv_ref[0, GSB:2 * GSB, :]        # (32, 8)
    v_hm = qkv_ref[0, 2 * GSB:3 * GSB, :]    # (32, 8)

    wq = wqkv_ref[0:HEAD_DIM, :]             # (8, 8)
    wk = wqkv_ref[HEAD_DIM:2 * HEAD_DIM, :]
    wv = wqkv_ref[2 * HEAD_DIM:3 * HEAD_DIM, :]

    # shared per-head projections, all heads at once
    qh = jnp.dot(q_hm, wq, preferred_element_type=jnp.float32)   # (32, 8)
    kh = jnp.dot(k_hm, wk, preferred_element_type=jnp.float32)
    vh = jnp.dot(v_hm, wv, preferred_element_type=jnp.float32)

    # ---- attention for all heads of this batch in one masked matmul ----
    # scores[n, m] = qh[n] . kh[m]   (kh^T never materialized)
    scores = jax.lax.dot_general(
        qh, kh, (((1,), (1,)), ((), ())),
        preferred_element_type=jnp.float32) * (1.0 / math.sqrt(HEAD_DIM))
    # precomputed additive block-diagonal mask (0 inside a head, -1e30 outside)
    scores = scores + wall_ref[R_MASK:R_MASK + GSB, 0:GSB]

    # softmax (row-wise); exact divide — EUP is idle either way
    m = jnp.max(scores, axis=-1, keepdims=True)
    p = jnp.exp(scores - m)
    p = p / jnp.sum(p, axis=-1, keepdims=True)

    ctx = jnp.dot(p, vh, preferred_element_type=jnp.float32)     # (32, 8)

    # ---- packed 1-D params (single aligned (8, 64) load, sliced as a value) ----
    prow = wall_ref[R_VEC:R_VEC + 8, :]      # (8, 64)
    bf1 = prow[0:1, :]                       # (1, 64)
    bo = prow[1:2, 0:E]
    g1 = prow[2:3, 0:E]
    be1 = prow[3:4, 0:E]
    bf2 = prow[4:5, 0:E]
    g2 = prow[5:6, 0:E]
    be2 = prow[6:7, 0:E]

    # ---- fused "concat heads + output projection" + bias + residual (value) ----
    wo = wall_ref[R_WO:R_WO + E, 0:E]        # (32, 32)
    x1 = val_ref[0, :, :] + bo               # (8, 32)
    for h in range(N_HEADS):                 # 4 static accumulating (8,8)x(8,32) dots
        x1 = x1 + jnp.dot(ctx[h * S:(h + 1) * S, :],
                          wo[h * HEAD_DIM:(h + 1) * HEAD_DIM, :],
                          preferred_element_type=jnp.float32)

    # ---- LayerNorm 1 ----
    mu = jnp.mean(x1, axis=-1, keepdims=True)
    var = jnp.mean((x1 - mu) ** 2, axis=-1, keepdims=True)
    n1 = (x1 - mu) * jax.lax.rsqrt(var + LN_EPS) * g1 + be1
    # TODO(synk): dropout1 / dropout2 are identity here (eval-mode forward).

    # ---- feed-forward: Linear -> ReLU -> Linear (w2^T pre-packed, never transposed here) ----
    w1 = wall_ref[R_W1:R_W1 + E, :]          # (32, 64)
    w2t = wall_ref[R_W2T:R_W2T + E, :]       # (32, 64) == w2^T
    h1 = jnp.maximum(
        jnp.dot(n1, w1, preferred_element_type=jnp.float32) + bf1, 0.0)
    ff = jax.lax.dot_general(h1, w2t, (((1,), (1,)), ((), ())),
                             preferred_element_type=jnp.float32) + bf2

    # ---- residual + LayerNorm 2 ----
    y = ff + n1
    mu2 = jnp.mean(y, axis=-1, keepdims=True)
    var2 = jnp.mean((y - mu2) ** 2, axis=-1, keepdims=True)
    out_ref[0, :, :] = (y - mu2) * jax.lax.rsqrt(var2 + LN_EPS) * g2 + be2


def pack_params(params):
    """One-time parameter packing (hoisted out of the per-call path)."""
    (wq, wk, wv, wo, bo, g1, be1, w1, bf1, w2, bf2, g2, be2) = params

    wqkv = jnp.concatenate([wq, wk, wv], axis=0)          # (24, 8)

    # trace-time numpy block-diagonal additive mask over head-major rows
    rg = np.arange(GSB)[:, None] // S
    cg = np.arange(GSB)[None, :] // S
    mask = np.where(rg == cg, 0.0, NEG_INF).astype(np.float32)   # (32, 32)

    w_all = jnp.zeros((W_ALL_ROWS, HIDDEN), jnp.float32)
    w_all = w_all.at[R_W1:R_W1 + E, :].set(w1)
    w_all = w_all.at[R_W2T:R_W2T + E, :].set(w2.T)
    w_all = w_all.at[R_WO:R_WO + E, 0:E].set(wo)
    w_all = w_all.at[R_MASK:R_MASK + GSB, 0:GSB].set(jnp.asarray(mask))
    w_all = w_all.at[R_VEC + 0, :].set(bf1)
    w_all = w_all.at[R_VEC + 1, 0:E].set(bo)
    w_all = w_all.at[R_VEC + 2, 0:E].set(g1)
    w_all = w_all.at[R_VEC + 3, 0:E].set(be1)
    w_all = w_all.at[R_VEC + 4, 0:E].set(bf2)
    w_all = w_all.at[R_VEC + 5, 0:E].set(g2)
    w_all = w_all.at[R_VEC + 6, 0:E].set(be2)
    return wqkv, w_all


@jax.jit
def transformer_block(key, query, value, wqkv, w_all):
    # per-call work is only activation layout plumbing + the pallas_call
    def to_head_major(t):   # (B,S,E) -> (B, N_HEADS*S, HEAD_DIM), rows ordered (h, s)
        return (t.reshape(B, S, N_HEADS, HEAD_DIM)
                 .transpose(0, 2, 1, 3)
                 .reshape(B, GSB, HEAD_DIM))

    qkv = jnp.concatenate([to_head_major(query),
                           to_head_major(key),
                           to_head_major(value)], axis=1)        # (B, 96, 8)

    grid_spec = pltpu.PrefetchScalarGridSpec(
        num_scalar_prefetch=0,
        grid=(B,),
        in_specs=[
            pl.BlockSpec((1, 3 * GSB, HEAD_DIM), lambda b: (b, 0, 0)),   # qkv
            pl.BlockSpec((1, S, E), lambda b: (b, 0, 0)),                # value (residual)
            pl.BlockSpec((3 * HEAD_DIM, HEAD_DIM), lambda b: (0, 0)),    # wqkv (resident)
            pl.BlockSpec((W_ALL_ROWS, HIDDEN), lambda b: (0, 0)),        # packed slab (resident)
        ],
        out_specs=pl.BlockSpec((1, S, E), lambda b: (b, 0, 0)),
    )

    return pl.pallas_call(
        transformer_block_kernel,
        out_shape=jax.ShapeDtypeStruct((B, S, E), jnp.float32),
        grid_spec=grid_spec,
        compiler_params=pltpu.CompilerParams(
            dimension_semantics=("parallel",)),
    )(qkv, value, wqkv, w_all)


# ---------- deterministic parameter init (synthetic, no checkpoint) ----------
def init_params(rng):
    ks = jax.random.split(rng, 8)
    scale = 0.1
    wq = jax.random.normal(ks[0], (HEAD_DIM, HEAD_DIM), jnp.float32) * scale
    wk = jax.random.normal(ks[1], (HEAD_DIM, HEAD_DIM), jnp.float32) * scale
    wv = jax.random.normal(ks[2], (HEAD_DIM, HEAD_DIM), jnp.float32) * scale
    wo = jax.random.normal(ks[3], (E, E), jnp.float32) * scale
    bo = jnp.zeros((E,), jnp.float32)
    g1 = jnp.ones((E,), jnp.float32)
    be1 = jnp.zeros((E,), jnp.float32)
    w1 = jax.random.normal(ks[4], (E, HIDDEN), jnp.float32) * scale
    bf1 = jax.random.normal(ks[5], (HIDDEN,), jnp.float32) * scale
    w2 = jax.random.normal(ks[6], (HIDDEN, E), jnp.float32) * scale
    bf2 = jax.random.normal(ks[7], (E,), jnp.float32) * scale
    g2 = jnp.ones((E,), jnp.float32)
    be2 = jnp.zeros((E,), jnp.float32)
    return (wq, wk, wv, wo, bo, g1, be1, w1, bf1, w2, bf2, g2, be2)


# ---------- pure-JAX reference (mirrors the PyTorch forward) ----------
def layer_norm_ref(x, g, b):
    mu = jnp.mean(x, axis=-1, keepdims=True)
    var = jnp.mean((x - mu) ** 2, axis=-1, keepdims=True)
    return (x - mu) * jax.lax.rsqrt(var + LN_EPS) * g + b


def reference(key, query, value, params):
    (wq, wk, wv, wo, bo, g1, be1, w1, bf1, w2, bf2, g2, be2) = params
    kh = key.reshape(B, S, N_HEADS, HEAD_DIM) @ wk
    qh = query.reshape(B, S, N_HEADS, HEAD_DIM) @ wq
    vh = value.reshape(B, S, N_HEADS, HEAD_DIM) @ wv
    qh = qh.transpose(0, 2, 1, 3)
    kh = kh.transpose(0, 2, 1, 3)
    vh = vh.transpose(0, 2, 1, 3)
    scores = jax.nn.softmax(
        (qh @ kh.transpose(0, 1, 3, 2)) / math.sqrt(HEAD_DIM), axis=-1)
    ctx = (scores @ vh).transpose(0, 2, 1, 3).reshape(B, S, E)
    attn = ctx @ wo + bo
    x = attn + value
    n1 = layer_norm_ref(x, g1, be1)
    ff = jnp.maximum(n1 @ w1 + bf1, 0.0) @ w2 + bf2
    return layer_norm_ref(ff + n1, g2, be2)


if __name__ == "__main__":
    root = jax.random.PRNGKey(0)
    k_k, k_q, k_v, k_p = jax.random.split(root, 4)
    key = jax.random.normal(k_k, (B, S, E), jnp.float32)
    query = jax.random.normal(k_q, (B, S, E), jnp.float32)
    value = jax.random.normal(k_v, (B, S, E), jnp.float32)
    params = init_params(k_p)

    # one-time parameter packing (NOT in the per-call path)
    wqkv, w_all = pack_params(params)
    wqkv = jax.block_until_ready(wqkv)
    w_all = jax.block_until_ready(w_all)

    out = transformer_block(key, query, value, wqkv, w_all)
    out = jax.block_until_ready(out)

    ref = reference(key, query, value, params)
    assert out.shape == (B, S, E)
    max_err = float(jnp.max(jnp.abs(out - ref)))
    assert jnp.allclose(out, ref, rtol=1e-3, atol=1e-3), \
        f"mismatch vs reference (max abs err {max_err})"

    print("KERNEL_OK")
</pallas_src>

<mosaic_0001>
module attributes {stable_mosaic.version = 11 : i64} {
  func.func @transformer_block_kernel(%arg0: i32, %arg1: memref<1x96x8xf32, #tpu.memory_space<vmem>>, %arg2: memref<1x8x32xf32, #tpu.memory_space<vmem>>, %arg3: memref<24x8xf32, #tpu.memory_space<vmem>>, %arg4: memref<136x64xf32, #tpu.memory_space<vmem>>, %arg5: memref<1x8x32xf32, #tpu.memory_space<vmem>>) attributes {dimension_semantics = [#tpu.dimension_semantics<parallel>], iteration_bounds = array<i64: 2>, scalar_prefetch = 0 : i64, scratch_operands = 0 : i64, tpu.core_type = #tpu.core_type<tc>, window_params = [{transform_indices = @transform_0, window_bounds = array<i64: 1, 96, 8>}, {transform_indices = @transform_1, window_bounds = array<i64: 1, 8, 32>}, {pipeline_mode = #tpu.pipeline_mode<synchronous>, transform_indices = @transform_2, window_bounds = array<i64: 24, 8>}, {pipeline_mode = #tpu.pipeline_mode<synchronous>, transform_indices = @transform_3, window_bounds = array<i64: 136, 64>}, {transform_indices = @transform_4, window_bounds = array<i64: 1, 8, 32>}]} {
    %c0 = arith.constant 0 : index
    %c0_0 = arith.constant 0 : index
    %c0_1 = arith.constant 0 : index
    %0 = vector.load %arg1[%c0, %c0_0, %c0_1] : memref<1x96x8xf32, #tpu.memory_space<vmem>>, vector<1x32x8xf32>
    %1 = vector.shape_cast %0 : vector<1x32x8xf32> to vector<32x8xf32>
    %c0_2 = arith.constant 0 : index
    %c32 = arith.constant 32 : index
    %c0_3 = arith.constant 0 : index
    %2 = vector.load %arg1[%c0_2, %c32, %c0_3] : memref<1x96x8xf32, #tpu.memory_space<vmem>>, vector<1x32x8xf32>
    %3 = vector.shape_cast %2 : vector<1x32x8xf32> to vector<32x8xf32>
    %c0_4 = arith.constant 0 : index
    %c64 = arith.constant 64 : index
    %c0_5 = arith.constant 0 : index
    %4 = vector.load %arg1[%c0_4, %c64, %c0_5] : memref<1x96x8xf32, #tpu.memory_space<vmem>>, vector<1x32x8xf32>
    %5 = vector.shape_cast %4 : vector<1x32x8xf32> to vector<32x8xf32>
    %c0_6 = arith.constant 0 : index
    %c0_7 = arith.constant 0 : index
    %6 = vector.load %arg3[%c0_6, %c0_7] : memref<24x8xf32, #tpu.memory_space<vmem>>, vector<8x8xf32>
    %c8 = arith.constant 8 : index
    %c0_8 = arith.constant 0 : index
    %7 = vector.load %arg3[%c8, %c0_8] : memref<24x8xf32, #tpu.memory_space<vmem>>, vector<8x8xf32>
    %c16 = arith.constant 16 : index
    %c0_9 = arith.constant 0 : index
    %8 = vector.load %arg3[%c16, %c0_9] : memref<24x8xf32, #tpu.memory_space<vmem>>, vector<8x8xf32>
    %cst = arith.constant dense<0.000000e+00> : vector<32x8xf32>
    %9 = tpu.matmul %1, %6, %cst {dimension_numbers = #tpu.dot_dimension_numbers<[1], [0], [0], [1], [0, 0, 1, 1], [], []>} : vector<32x8xf32>, vector<8x8xf32>, vector<32x8xf32> -> vector<32x8xf32>
    %cst_10 = arith.constant dense<0.000000e+00> : vector<32x8xf32>
    %10 = tpu.matmul %3, %7, %cst_10 {dimension_numbers = #tpu.dot_dimension_numbers<[1], [0], [0], [1], [0, 0, 1, 1], [], []>} : vector<32x8xf32>, vector<8x8xf32>, vector<32x8xf32> -> vector<32x8xf32>
    %cst_11 = arith.constant dense<0.000000e+00> : vector<32x8xf32>
    %11 = tpu.matmul %5, %8, %cst_11 {dimension_numbers = #tpu.dot_dimension_numbers<[1], [0], [0], [1], [0, 0, 1, 1], [], []>} : vector<32x8xf32>, vector<8x8xf32>, vector<32x8xf32> -> vector<32x8xf32>
    %cst_12 = arith.constant dense<0.000000e+00> : vector<32x32xf32>
    %12 = tpu.matmul %9, %10, %cst_12 {dimension_numbers = #tpu.dot_dimension_numbers<[1], [1], [0], [0], [0, 0, 1, 0], [], []>} : vector<32x8xf32>, vector<32x8xf32>, vector<32x32xf32> -> vector<32x32xf32>
    %cst_13 = arith.constant 0.353553385 : f32
    %13 = vector.broadcast %cst_13 : f32 to vector<32x32xf32>
    %14 = arith.mulf %12, %13 : vector<32x32xf32>
    %c96 = arith.constant 96 : index
    %c0_14 = arith.constant 0 : index
    %15 = vector.load %arg4[%c96, %c0_14] : memref<136x64xf32, #tpu.memory_space<vmem>>, vector<32x32xf32>
    %16 = arith.addf %14, %15 : vector<32x32xf32>
    %cst_15 = arith.constant dense<0xFF800000> : vector<32xf32>
    %17 = vector.multi_reduction <maximumf>, %16, %cst_15 [1] : vector<32x32xf32> to vector<32xf32>
    %18 = vector.shape_cast %17 : vector<32xf32> to vector<32x1xf32>
    %19 = vector.broadcast %18 : vector<32x1xf32> to vector<32x32xf32>
    %20 = arith.subf %16, %19 : vector<32x32xf32>
    %21 = math.exp %20 : vector<32x32xf32>
    %cst_16 = arith.constant dense<0.000000e+00> : vector<32xf32>
    %22 = vector.multi_reduction <add>, %21, %cst_16 [1] : vector<32x32xf32> to vector<32xf32>
    %23 = vector.shape_cast %22 : vector<32xf32> to vector<32x1xf32>
    %24 = vector.broadcast %23 : vector<32x1xf32> to vector<32x32xf32>
    %25 = arith.divf %21, %24 : vector<32x32xf32>
    %cst_17 = arith.constant dense<0.000000e+00> : vector<32x8xf32>
    %26 = tpu.matmul %25, %11, %cst_17 {dimension_numbers = #tpu.dot_dimension_numbers<[1], [0], [0], [1], [0, 0, 1, 1], [], []>} : vector<32x32xf32>, vector<32x8xf32>, vector<32x8xf32> -> vector<32x8xf32>
    %c128 = arith.constant 128 : index
    %c0_18 = arith.constant 0 : index
    %27 = vector.load %arg4[%c128, %c0_18] : memref<136x64xf32, #tpu.memory_space<vmem>>, vector<8x64xf32>
    %28 = vector.extract_strided_slice %27 {offsets = [0, 0], sizes = [1, 64], strides = [1, 1]} : vector<8x64xf32> to vector<1x64xf32>
    %29 = vector.extract_strided_slice %27 {offsets = [1, 0], sizes = [1, 32], strides = [1, 1]} : vector<8x64xf32> to vector<1x32xf32>
    %30 = vector.extract_strided_slice %27 {offsets = [2, 0], sizes = [1, 32], strides = [1, 1]} : vector<8x64xf32> to vector<1x32xf32>
    %31 = vector.extract_strided_slice %27 {offsets = [3, 0], sizes = [1, 32], strides = [1, 1]} : vector<8x64xf32> to vector<1x32xf32>
    %32 = vector.extract_strided_slice %27 {offsets = [4, 0], sizes = [1, 32], strides = [1, 1]} : vector<8x64xf32> to vector<1x32xf32>
    %33 = vector.extract_strided_slice %27 {offsets = [5, 0], sizes = [1, 32], strides = [1, 1]} : vector<8x64xf32> to vector<1x32xf32>
    %34 = vector.extract_strided_slice %27 {offsets = [6, 0], sizes = [1, 32], strides = [1, 1]} : vector<8x64xf32> to vector<1x32xf32>
    %c64_19 = arith.constant 64 : index
    %c0_20 = arith.constant 0 : index
    %35 = vector.load %arg4[%c64_19, %c0_20] : memref<136x64xf32, #tpu.memory_space<vmem>>, vector<32x32xf32>
    %c0_21 = arith.constant 0 : index
    %c0_22 = arith.constant 0 : index
    %c0_23 = arith.constant 0 : index
    %36 = vector.load %arg2[%c0_21, %c0_22, %c0_23] : memref<1x8x32xf32, #tpu.memory_space<vmem>>, vector<1x8x32xf32>
    %37 = vector.shape_cast %36 : vector<1x8x32xf32> to vector<8x32xf32>
    %38 = vector.broadcast %29 : vector<1x32xf32> to vector<8x32xf32>
    %39 = arith.addf %37, %38 : vector<8x32xf32>
    %40 = vector.extract_strided_slice %26 {offsets = [0, 0], sizes = [8, 8], strides = [1, 1]} : vector<32x8xf32> to vector<8x8xf32>
    %41 = vector.extract_strided_slice %35 {offsets = [0, 0], sizes = [8, 32], strides = [1, 1]} : vector<32x32xf32> to vector<8x32xf32>
    %cst_24 = arith.constant dense<0.000000e+00> : vector<8x32xf32>
    %42 = tpu.matmul %40, %41, %cst_24 {dimension_numbers = #tpu.dot_dimension_numbers<[1], [0], [0], [1], [0, 0, 1, 1], [], []>} : vector<8x8xf32>, vector<8x32xf32>, vector<8x32xf32> -> vector<8x32xf32>
    %43 = arith.addf %39, %42 : vector<8x32xf32>
    %44 = vector.extract_strided_slice %26 {offsets = [8, 0], sizes = [8, 8], strides = [1, 1]} : vector<32x8xf32> to vector<8x8xf32>
    %45 = vector.extract_strided_slice %35 {offsets = [8, 0], sizes = [8, 32], strides = [1, 1]} : vector<32x32xf32> to vector<8x32xf32>
    %cst_25 = arith.constant dense<0.000000e+00> : vector<8x32xf32>
    %46 = tpu.matmul %44, %45, %cst_25 {dimension_numbers = #tpu.dot_dimension_numbers<[1], [0], [0], [1], [0, 0, 1, 1], [], []>} : vector<8x8xf32>, vector<8x32xf32>, vector<8x32xf32> -> vector<8x32xf32>
    %47 = arith.addf %43, %46 : vector<8x32xf32>
    %48 = vector.extract_strided_slice %26 {offsets = [16, 0], sizes = [8, 8], strides = [1, 1]} : vector<32x8xf32> to vector<8x8xf32>
    %49 = vector.extract_strided_slice %35 {offsets = [16, 0], sizes = [8, 32], strides = [1, 1]} : vector<32x32xf32> to vector<8x32xf32>
    %cst_26 = arith.constant dense<0.000000e+00> : vector<8x32xf32>
    %50 = tpu.matmul %48, %49, %cst_26 {dimension_numbers = #tpu.dot_dimension_numbers<[1], [0], [0], [1], [0, 0, 1, 1], [], []>} : vector<8x8xf32>, vector<8x32xf32>, vector<8x32xf32> -> vector<8x32xf32>
    %51 = arith.addf %47, %50 : vector<8x32xf32>
    %52 = vector.extract_strided_slice %26 {offsets = [24, 0], sizes = [8, 8], strides = [1, 1]} : vector<32x8xf32> to vector<8x8xf32>
    %53 = vector.extract_strided_slice %35 {offsets = [24, 0], sizes = [8, 32], strides = [1, 1]} : vector<32x32xf32> to vector<8x32xf32>
    %cst_27 = arith.constant dense<0.000000e+00> : vector<8x32xf32>
    %54 = tpu.matmul %52, %53, %cst_27 {dimension_numbers = #tpu.dot_dimension_numbers<[1], [0], [0], [1], [0, 0, 1, 1], [], []>} : vector<8x8xf32>, vector<8x32xf32>, vector<8x32xf32> -> vector<8x32xf32>
    %55 = arith.addf %51, %54 : vector<8x32xf32>
    %cst_28 = arith.constant dense<0.000000e+00> : vector<8xf32>
    %56 = vector.multi_reduction <add>, %55, %cst_28 [1] : vector<8x32xf32> to vector<8xf32>
    %57 = vector.shape_cast %56 : vector<8xf32> to vector<8x1xf32>
    %cst_29 = arith.constant 3.200000e+01 : f32
    %58 = vector.broadcast %cst_29 : f32 to vector<8x1xf32>
    %59 = arith.divf %57, %58 : vector<8x1xf32>
    %60 = vector.broadcast %59 : vector<8x1xf32> to vector<8x32xf32>
    %61 = arith.subf %55, %60 : vector<8x32xf32>
    %62 = arith.mulf %61, %61 : vector<8x32xf32>
    %cst_30 = arith.constant dense<0.000000e+00> : vector<8xf32>
    %63 = vector.multi_reduction <add>, %62, %cst_30 [1] : vector<8x32xf32> to vector<8xf32>
    %64 = vector.shape_cast %63 : vector<8xf32> to vector<8x1xf32>
    %cst_31 = arith.constant 3.200000e+01 : f32
    %65 = vector.broadcast %cst_31 : f32 to vector<8x1xf32>
    %66 = arith.divf %64, %65 : vector<8x1xf32>
    %67 = vector.broadcast %59 : vector<8x1xf32> to vector<8x32xf32>
    %68 = arith.subf %55, %67 : vector<8x32xf32>
    %cst_32 = arith.constant 9.99999974E-6 : f32
    %69 = vector.broadcast %cst_32 : f32 to vector<8x1xf32>
    %70 = arith.addf %66, %69 : vector<8x1xf32>
    %71 = math.rsqrt %70 : vector<8x1xf32>
    %72 = vector.broadcast %71 : vector<8x1xf32> to vector<8x32xf32>
    %73 = arith.mulf %68, %72 : vector<8x32xf32>
    %74 = vector.broadcast %30 : vector<1x32xf32> to vector<8x32xf32>
    %75 = arith.mulf %73, %74 : vector<8x32xf32>
    %76 = vector.broadcast %31 : vector<1x32xf32> to vector<8x32xf32>
    %77 = arith.addf %75, %76 : vector<8x32xf32>
    %c0_33 = arith.constant 0 : index
    %c0_34 = arith.constant 0 : index
    %78 = vector.load %arg4[%c0_33, %c0_34] : memref<136x64xf32, #tpu.memory_space<vmem>>, vector<32x64xf32>
    %c32_35 = arith.constant 32 : index
    %c0_36 = arith.constant 0 : index
    %79 = vector.load %arg4[%c32_35, %c0_36] : memref<136x64xf32, #tpu.memory_space<vmem>>, vector<32x64xf32>
    %cst_37 = arith.constant dense<0.000000e+00> : vector<8x64xf32>
    %80 = tpu.matmul %77, %78, %cst_37 {dimension_numbers = #tpu.dot_dimension_numbers<[1], [0], [0], [1], [0, 0, 1, 1], [], []>} : vector<8x32xf32>, vector<32x64xf32>, vector<8x64xf32> -> vector<8x64xf32>
    %81 = vector.broadcast %28 : vector<1x64xf32> to vector<8x64xf32>
    %82 = arith.addf %80, %81 : vector<8x64xf32>
    %cst_38 = arith.constant 0.000000e+00 : f32
    %83 = vector.broadcast %cst_38 : f32 to vector<8x64xf32>
    %84 = arith.maximumf %82, %83 : vector<8x64xf32>
    %cst_39 = arith.constant dense<0.000000e+00> : vector<8x32xf32>
    %85 = tpu.matmul %84, %79, %cst_39 {dimension_numbers = #tpu.dot_dimension_numbers<[1], [1], [0], [0], [0, 0, 1, 0], [], []>} : vector<8x64xf32>, vector<32x64xf32>, vector<8x32xf32> -> vector<8x32xf32>
    %86 = vector.broadcast %32 : vector<1x32xf32> to vector<8x32xf32>
    %87 = arith.addf %85, %86 : vector<8x32xf32>
    %88 = arith.addf %87, %77 : vector<8x32xf32>
    %cst_40 = arith.constant dense<0.000000e+00> : vector<8xf32>
    %89 = vector.multi_reduction <add>, %88, %cst_40 [1] : vector<8x32xf32> to vector<8xf32>
    %90 = vector.shape_cast %89 : vector<8xf32> to vector<8x1xf32>
    %cst_41 = arith.constant 3.200000e+01 : f32
    %91 = vector.broadcast %cst_41 : f32 to vector<8x1xf32>
    %92 = arith.divf %90, %91 : vector<8x1xf32>
    %93 = vector.broadcast %92 : vector<8x1xf32> to vector<8x32xf32>
    %94 = arith.subf %88, %93 : vector<8x32xf32>
    %95 = arith.mulf %94, %94 : vector<8x32xf32>
    %cst_42 = arith.constant dense<0.000000e+00> : vector<8xf32>
    %96 = vector.multi_reduction <add>, %95, %cst_42 [1] : vector<8x32xf32> to vector<8xf32>
    %97 = vector.shape_cast %96 : vector<8xf32> to vector<8x1xf32>
    %cst_43 = arith.constant 3.200000e+01 : f32
    %98 = vector.broadcast %cst_43 : f32 to vector<8x1xf32>
    %99 = arith.divf %97, %98 : vector<8x1xf32>
    %100 = vector.broadcast %92 : vector<8x1xf32> to vector<8x32xf32>
    %101 = arith.subf %88, %100 : vector<8x32xf32>
    %cst_44 = arith.constant 9.99999974E-6 : f32
    %102 = vector.broadcast %cst_44 : f32 to vector<8x1xf32>
    %103 = arith.addf %99, %102 : vector<8x1xf32>
    %104 = math.rsqrt %103 : vector<8x1xf32>
    %105 = vector.broadcast %104 : vector<8x1xf32> to vector<8x32xf32>
    %106 = arith.mulf %101, %105 : vector<8x32xf32>
    %107 = vector.broadcast %33 : vector<1x32xf32> to vector<8x32xf32>
    %108 = arith.mulf %106, %107 : vector<8x32xf32>
    %109 = vector.broadcast %34 : vector<1x32xf32> to vector<8x32xf32>
    %110 = arith.addf %108, %109 : vector<8x32xf32>
    %c0_45 = arith.constant 0 : index
    %c0_46 = arith.constant 0 : index
    %c0_47 = arith.constant 0 : index
    %111 = vector.load %arg5[%c0_45, %c0_46, %c0_47] : memref<1x8x32xf32, #tpu.memory_space<vmem>>, vector<1x8x32xf32>
    %112 = vector.shape_cast %111 : vector<1x8x32xf32> to vector<8x32xf32>
    %113 = vector.shape_cast %110 : vector<8x32xf32> to vector<1x8x32xf32>
    tpu.vector_store %arg5[%c0_45, %c0_46, %c0_47], %113 {strides = array<i32>} : memref<1x8x32xf32, #tpu.memory_space<vmem>>, vector<1x8x32xf32>,
    return
  }
  func.func @transform_0(%arg0: i32) -> (i32, i32, i32) {
    %c0_i32 = arith.constant 0 : i32
    %c0_i32_0 = arith.constant 0 : i32
    %c0_i32_1 = arith.constant 0 : i32
    return %arg0, %c0_i32, %c0_i32_0 : i32, i32, i32
  }
  func.func @transform_1(%arg0: i32) -> (i32, i32, i32) {
    %c0_i32 = arith.constant 0 : i32
    %c0_i32_0 = arith.constant 0 : i32
    %c0_i32_1 = arith.constant 0 : i32
    return %arg0, %c0_i32, %c0_i32_0 : i32, i32, i32
  }
  func.func @transform_2(%arg0: i32) -> (i32, i32) {
    %c0_i32 = arith.constant 0 : i32
    %c0_i32_0 = arith.constant 0 : i32
    %c0_i32_1 = arith.constant 0 : i32
    return %c0_i32, %c0_i32_0 : i32, i32
  }
  func.func @transform_3(%arg0: i32) -> (i32, i32) {
    %c0_i32 = arith.constant 0 : i32
    %c0_i32_0 = arith.constant 0 : i32
    %c0_i32_1 = arith.constant 0 : i32
    return %c0_i32, %c0_i32_0 : i32, i32
  }
  func.func @transform_4(%arg0: i32) -> (i32, i32, i32) {
    %c0_i32 = arith.constant 0 : i32
    %c0_i32_0 = arith.constant 0 : i32
    %c0_i32_1 = arith.constant 0 : i32
    return %arg0, %c0_i32, %c0_i32_0 : i32, i32, i32
  }
}

</mosaic_0001>

<llo_original>
// kernel: transformer_block.1
$region0: #{transformer_block.1}
  #allocation0 [shape = 'u32[]', space=smem, size = 0x4, offset = 0x4, fixed_abs, tag = 'smem constant byte address 0x4 - core index']
  #allocation1 [shape = 'u32[144,128]{1,0:T(1,128)}', space=vmem, size = 0x12000, scoped, tag = 'internal scratch']
  %s0 = inlined_call_operand.vmem [shape: f32[2,96,8], index: 0, kind: input, shape index: {}]
  %s1 = inlined_call_operand.vmem [shape: f32[2,8,32], index: 1, kind: input, shape index: {}]
  %s2 = inlined_call_operand.vmem [shape: f32[24,8], index: 2, kind: input, shape index: {}]
  %s3 = inlined_call_operand.vmem [shape: f32[136,64], index: 3, kind: input, shape index: {}]
  %s4 = inlined_call_operand.hbm [shape: f32[2,8,32], index: 4, kind: output, shape index: {}]
  %s5 = sld [smem:[#allocation0]]
  $region49: #{transformer_block.1} parent=0
    _
  %s7 = ssub.s32 1, %s5
  %s8 = scalar_select 0, %s7, %s5
  $region1: #{transformer_block.1} parent=0
    #allocation2 [shape = 'u8[8192]{0}', space=vmem, size = 0x2000, scoped, tag = 'output window, operand 0']
    #allocation3 [shape = 's32[2]{0}', space=sflag, size = 0x8, scoped, tag = 'scoped memory for transformer_block.1']
    %9 = vsyncpa [#allocation3], 0
    %s10 = scalar_lea.sflag [#allocation3], 1
    %11 = vsyncpa %s10, 0
    loop: start=0, step=1, limit=4
    $region2: #{transformer_block.1} parent=1 // loop_pre_header
      _
    $region3: #{transformer_block.1} parent=1 // loop_header
      %s13 = sphi 0, %s17
      %p14 = scmp.ge.s32.totalorder %s13, 4
      %s23 = sphi 0, %s25
      %s26 = sphi 0, %s23
      %s27 = sphi 0, %s26
      %s43 = sphi 0, %s27
      %s49 = sphi 0, %s51
      %s52 = sphi 0, %s49
      %s53 = sphi 0, %s52
      %s69 = sphi 0, %s53
      %s73 = sphi 0, %s73
      %s75 = sphi 0, %s73
      %s76 = sphi 0, %s75
      %s90 = sphi 0, %s76
      %s94 = sphi 0, %s94
      %s96 = sphi 0, %s94
      %s97 = sphi 0, %s96
      %s111 = sphi 0, %s97
      %s117 = sphi 0, %s119
      %s120 = sphi 0, %s117
      %s121 = sphi 0, %s120
      %s137 = sphi 0, %s121
    $region4: #{transformer_block.1} parent=1 // loop_header_branch
      %16 = sbr.rel (%p14) target = $region8
    $region5: #{transformer_block.1} parent=1 // loop_body
      %s18 = ssub.s32 %s13, 1
      %s19 = ssub.s32 %s13, 2
      %s20 = sadd.s32 %s13, 1
      %s21 = ssub.s32 %s13, %s20
      %p22 = scmp.eq.s32.totalorder %s21, 0
      %s24 = sadd.s32 %s23, 1
      %s25 = scalar_select %p22, %s23, %s24
      %p28 = pneg %p22
      %p29 = scmp.eq.s32.totalorder %s13, 1
      %p30 = por %p28, %p29
      %p31 = scmp.ne.s32.totalorder %s23, %s26
      %p32 = scmp.eq.s32.totalorder %s13, 0
      %p33 = por %p31, %p32
      %p34 = scmp.ne.s32.totalorder %s23, %s26
      %p35 = scmp.eq.s32.totalorder %s18, 1
      %p36 = por %p34, %p35
      %p37 = scmp.ne.s32.totalorder %s26, %s27
      %p38 = scmp.eq.s32.totalorder %s18, 0
      %p39 = por %p37, %p38
      %p40 = scmp.ne.s32.totalorder %s26, %s27
      %p41 = scmp.eq.s32.totalorder %s19, 1
      %p42 = por %p40, %p41
      %p44 = scmp.ne.s32.totalorder %s27, %s43
      %p45 = scmp.eq.s32.totalorder %s19, 0
      %p46 = por %p44, %p45
      %s47 = ssub.s32 %s13, %s20
      %p48 = scmp.eq.s32.totalorder %s47, 0
      %s50 = sadd.s32 %s49, 1
      %s51 = scalar_select %p48, %s49, %s50
      %p54 = pneg %p48
      %p55 = scmp.eq.s32.totalorder %s13, 1
      %p56 = por %p54, %p55
      %p57 = scmp.ne.s32.totalorder %s49, %s52
      %p58 = scmp.eq.s32.totalorder %s13, 0
      %p59 = por %p57, %p58
      %p60 = scmp.ne.s32.totalorder %s49, %s52
      %p61 = scmp.eq.s32.totalorder %s18, 1
      %p62 = por %p60, %p61
      %p63 = scmp.ne.s32.totalorder %s52, %s53
      %p64 = scmp.eq.s32.totalorder %s18, 0
      %p65 = por %p63, %p64
      %p66 = scmp.ne.s32.totalorder %s52, %s53
      %p67 = scmp.eq.s32.totalorder %s19, 1
      %p68 = por %p66, %p67
      %p70 = scmp.ne.s32.totalorder %s53, %s69
      %p71 = scmp.eq.s32.totalorder %s19, 0
      %p72 = por %p70, %p71
      %s74 = sadd.s32 %s73, 1
      %p77 = scmp.eq.s32.totalorder %s13, 1
      %p78 = scmp.ne.s32.totalorder %s73, %s75
      %p79 = scmp.eq.s32.totalorder %s13, 0
      %p80 = por %p78, %p79
      %p81 = scmp.ne.s32.totalorder %s73, %s75
      %p82 = scmp.eq.s32.totalorder %s18, 1
      %p83 = por %p81, %p82
      %p84 = scmp.ne.s32.totalorder %s75, %s76
      %p85 = scmp.eq.s32.totalorder %s18, 0
      %p86 = por %p84, %p85
      %p87 = scmp.ne.s32.totalorder %s75, %s76
      %p88 = scmp.eq.s32.totalorder %s19, 1
      %p89 = por %p87, %p88
      %p91 = scmp.ne.s32.totalorder %s76, %s90
      %p92 = scmp.eq.s32.totalorder %s19, 0
      %p93 = por %p91, %p92
      %s95 = sadd.s32 %s94, 1
      %p98 = scmp.eq.s32.totalorder %s13, 1
      %p99 = scmp.ne.s32.totalorder %s94, %s96
      %p100 = scmp.eq.s32.totalorder %s13, 0
      %p101 = por %p99, %p100
      %p102 = scmp.ne.s32.totalorder %s94, %s96
      %p103 = scmp.eq.s32.totalorder %s18, 1
      %p104 = por %p102, %p103
      %p105 = scmp.ne.s32.totalorder %s96, %s97
      %p106 = scmp.eq.s32.totalorder %s18, 0
      %p107 = por %p105, %p106
      %p108 = scmp.ne.s32.totalorder %s96, %s97
      %p109 = scmp.eq.s32.totalorder %s19, 1
      %p110 = por %p108, %p109
      %p112 = scmp.ne.s32.totalorder %s97, %s111
      %p113 = scmp.eq.s32.totalorder %s19, 0
      %p114 = por %p112, %p113
      %s115 = ssub.s32 %s13, %s20
      %p116 = scmp.eq.s32.totalorder %s115, 0
      %s118 = sadd.s32 %s117, 1
      %s119 = scalar_select %p116, %s117, %s118
      %p122 = pneg %p116
      %p123 = scmp.eq.s32.totalorder %s13, 1
      %p124 = por %p122, %p123
      %p125 = scmp.ne.s32.totalorder %s117, %s120
      %p126 = scmp.eq.s32.totalorder %s13, 0
      %p127 = por %p125, %p126
      %p128 = scmp.ne.s32.totalorder %s117, %s120
      %p129 = scmp.eq.s32.totalorder %s18, 1
      %p130 = por %p128, %p129
      %p131 = scmp.ne.s32.totalorder %s120, %s121
      %p132 = scmp.eq.s32.totalorder %s18, 0
      %p133 = por %p131, %p132
      %p134 = scmp.ne.s32.totalorder %s120, %s121
      %p135 = scmp.eq.s32.totalorder %s19, 1
      %p136 = por %p134, %p135
      %p138 = scmp.ne.s32.totalorder %s121, %s137
      %p139 = scmp.eq.s32.totalorder %s19, 0
      %p140 = por %p138, %p139
      %p141 = scmp.le.s32.totalorder 1, %s13
      %p142 = scmp.lt.s32.totalorder %s13, 3
      %p143 = pnand %p141, %p142
      %p144 = pneg %p143
      // Predicated region
      $region9: #{transformer_block.1} parent=5 // pred_check
        _
      $region10: #{transformer_block.1} parent=5 // pred_check_branch
        %146 = sbr.rel (%p143) target = $region12
      $region11: #{transformer_block.1} parent=5 // pred_region
        %s147 = ssub.s32 %s13, 1
        // Predicated region
        $region13: #{transformer_block.1} parent=11 // pred_check
          %p148 = pneg %p86
        $region14: #{transformer_block.1} parent=11 // pred_check_branch
          %150 = sbr.rel (%p148) target = $region16
        $region15: #{transformer_block.1} parent=11 // pred_region
          _
        $region16: #{transformer_block.1} parent=11 // pred_fallthru
          _
        // Predicated region
        $region17: #{transformer_block.1} parent=11 // pred_check
          %p151 = pneg %p107
        $region18: #{transformer_block.1} parent=11 // pred_check_branch
          %153 = sbr.rel (%p151) target = $region20
        $region19: #{transformer_block.1} parent=11 // pred_region
          _
        $region20: #{transformer_block.1} parent=11 // pred_fallthru
          _
      $region12: #{transformer_block.1} parent=5 // pred_fallthru
        _
      %p154 = scmp.lt.s32.totalorder %s13, 2
      // Predicated region
      $region21: #{transformer_block.1} parent=5 // pred_check
        %p155 = pneg %p154
      $region22: #{transformer_block.1} parent=5 // pred_check_branch
        %157 = sbr.rel (%p155) target = $region24
      $region23: #{transformer_block.1} parent=5 // pred_region
        // Predicated region
        $region25: #{transformer_block.1} parent=23 // pred_check
          %p158 = pneg %p33
        $region26: #{transformer_block.1} parent=23 // pred_check_branch
          %160 = sbr.rel (%p158) target = $region28
        $region27: #{transformer_block.1} parent=23 // pred_region
          %p161 = scmp.lt.s32.totalorder %s13, 1
          %s162 = scalar_select %p161, %s13, 1
          %s163 = smul.addr %s162, 12
          %s164 = smul.addr %s163, 8
          %s165 = scalar_lea.vmem %s0, %s164
        $region28: #{transformer_block.1} parent=23 // pred_fallthru
          _
        // Predicated region
        $region29: #{transformer_block.1} parent=23 // pred_check
          %p166 = pneg %p59
        $region30: #{transformer_block.1} parent=23 // pred_check_branch
          %168 = sbr.rel (%p166) target = $region32
        $region31: #{transformer_block.1} parent=23 // pred_region
          %p169 = scmp.lt.s32.totalorder %s13, 1
          %s170 = scalar_select %p169, %s13, 1
          %s171 = smul.addr %s170, 8
          %s172 = scalar_lea.vmem %s1, %s171
        $region32: #{transformer_block.1} parent=23 // pred_fallthru
          _
      $region24: #{transformer_block.1} parent=5 // pred_fallthru
        _
      %p173 = scmp.le.s32.totalorder 1, %s13
      %p174 = scmp.lt.s32.totalorder %s13, 3
      %p175 = pnand %p173, %p174
      %p176 = pneg %p175
      // Predicated region
      $region33: #{transformer_block.1} parent=5 // pred_check
        _
      $region34: #{transformer_block.1} parent=5 // pred_check_branch
        %178 = sbr.rel (%p175) target = $region36
      $region35: #{transformer_block.1} parent=5 // pred_region
        %s179 = ssub.s32 %s13, 1
        %p180 = scmp.lt.s32.totalorder %s18, 1
        %s181 = scalar_select %p180, %s18, 1
        %s182 = smul.addr %s181, 12
        %s183 = smul.addr %s182, 8
        %s184 = scalar_lea.vmem %s0, %s183
        %p185 = pneg %p39
        %p186 = pneg %p36
        %p187 = scmp.lt.s32.totalorder %s18, 1
        %s188 = scalar_select %p187, %s18, 1
        %s189 = smul.addr %s188, 8
        %s190 = scalar_lea.vmem %s1, %s189
        %p191 = pneg %p65
        %p192 = pneg %p62
        %p193 = pneg %p86
        %p194 = pneg %p83
        %p195 = pneg %p107
        %p196 = pneg %p104
        %p197 = pneg %p133
        %p198 = pneg %p130
        %s199 = sand.u32 %s120, 1
        %s200 = scalar_lea.sflag [#allocation3], %s199
        %s201 = sand.u32 %s120, 1
        %s202 = smul.addr %s201, 8
        %s203 = scalar_lea.vmem [#allocation2], %s202
        %p204 = scmp.lt.s32.totalorder %s18, 1
        %s205 = scalar_select %p204, %s18, 1
        %s206 = smul.addr %s205, 12
        %s207 = smul.addr %s206, 8
        %s208 = scalar_lea.vmem %s0, %s207
        %p209 = scmp.lt.s32.totalorder %s18, 1
        %s210 = scalar_select %p209, %s18, 1
        %s211 = smul.addr %s210, 8
        %s212 = scalar_lea.vmem %s1, %s211
        %v213 = vld [vmem:[%s208] sm:$0xff]
        %v214 = vld [vmem:[%s208 + $0x8] sm:$0xff]
        %v215 = vld [vmem:[%s208 + $0x10] sm:$0xff]
        %v216 = vld [vmem:[%s208 + $0x18] sm:$0xff]
        %v217 = vld [vmem:[%s208 + $0x20] sm:$0xff]
        %v218 = vld [vmem:[%s208 + $0x28] sm:$0xff]
        %v219 = vld [vmem:[%s208 + $0x30] sm:$0xff]
        %v220 = vld [vmem:[%s208 + $0x38] sm:$0xff]
        %v221 = vld [vmem:[%s208 + $0x40] sm:$0xff]
        %v222 = vld [vmem:[%s208 + $0x48] sm:$0xff]
        %v223 = vld [vmem:[%s208 + $0x50] sm:$0xff]
        %v224 = vld [vmem:[%s208 + $0x58] sm:$0xff]
        %v225 = vld [vmem:[%s2] sm:$0xff]
        %v226 = vld [vmem:[%s2 + $0x8] sm:$0xff]
        %v227 = vld [vmem:[%s2 + $0x10] sm:$0xff]
        %vm228 = vcmask 64512
        %v230 = vsel %vm228, %v213, 0
        %v233 = vsel %vm228, %v214, 0
        %v236 = vsel %vm228, %v215, 0
        %v239 = vsel %vm228, %v216, 0
        %241 = vmatprep.subr.mxu0 0.0
        %242 = vmatpush1.msra.mxu0 0.0
        %243 = vmatprep.subr.mxu0 0.0
        %244 = vmatpush1.msra.mxu0 0.0
        %245 = vmatprep.subr.mxu0 0.0
        %246 = vmatpush1.msra.mxu0 0.0
        %247 = vmatprep.subr.mxu0 0.0
        %248 = vmatpush1.msra.mxu0 0.0
        %249 = vmatprep.subr.mxu0 0.0
        %250 = vmatpush1.msra.mxu0 0.0
        %251 = vmatprep.subr.mxu0 0.0
        %252 = vmatpush1.msra.mxu0 0.0
        %253 = vmatprep.subr.mxu0 0.0
        %254 = vmatpush1.msra.mxu0 0.0
        %255 = vmatprep.subr.mxu0 0.0
        %256 = vmatpush1.msra.mxu0 0.0
        %257 = vmatprep.subr.mxu0 0.0
        %258 = vmatpush1.msra.mxu0 0.0
        %259 = vmatprep.subr.mxu0 0.0
        %260 = vmatpush1.msra.mxu0 0.0
        %261 = vmatprep.subr.mxu0 0.0
        %262 = vmatpush1.msra.mxu0 0.0
        %263 = vmatprep.subr.mxu0 0.0
        %264 = vmatpush1.msra.mxu0 0.0
        %265 = vmatprep.subr.mxu0 0.0
        %266 = vmatpush1.msra.mxu0 0.0
        %267 = vmatprep.subr.mxu0 0.0
        %268 = vmatpush1.msra.mxu0 0.0
        %269 = vmatprep.subr.mxu0 0.0
        %270 = vmatpush1.msra.mxu0 0.0
        %271 = vmatprep.subr.mxu0 0.0
        %272 = vmatpush1.msra.mxu0 %v225
        %273 = vmatprep.subr.mxu0 0.0
        %274 = vmatpush2.msra.mxu0 0.0
        %275 = vmatprep.subr.mxu0 0.0
        %276 = vmatpush2.msra.mxu0 0.0
        %277 = vmatprep.subr.mxu0 0.0
        %278 = vmatpush2.msra.mxu0 0.0
        %279 = vmatprep.subr.mxu0 0.0
        %280 = vmatpush2.msra.mxu0 0.0
        %281 = vmatprep.subr.mxu0 0.0
        %282 = vmatpush2.msra.mxu0 0.0
        %283 = vmatprep.subr.mxu0 0.0
        %284 = vmatpush2.msra.mxu0 0.0
        %285 = vmatprep.subr.mxu0 0.0
        %286 = vmatpush2.msra.mxu0 0.0
        %287 = vmatprep.subr.mxu0 0.0
        %288 = vmatpush2.msra.mxu0 0.0
        %289 = vmatprep.subr.mxu0 0.0
        %290 = vmatpush2.msra.mxu0 0.0
        %291 = vmatprep.subr.mxu0 0.0
        %292 = vmatpush2.msra.mxu0 0.0
        %293 = vmatprep.subr.mxu0 0.0
        %294 = vmatpush2.msra.mxu0 0.0
        %295 = vmatprep.subr.mxu0 0.0
        %296 = vmatpush2.msra.mxu0 0.0
        %297 = vmatprep.subr.mxu0 0.0
        %298 = vmatpush2.msra.mxu0 0.0
        %299 = vmatprep.subr.mxu0 0.0
        %300 = vmatpush2.msra.mxu0 0.0
        %301 = vmatprep.subr.mxu0 0.0
        %302 = vmatpush2.msra.mxu0 0.0
        %303 = vmatprep.subr.mxu0 0.0
        %304 = vmatpush2.msra.mxu0 0.0
        %305 = vmatprep.mubr.f32.mxu0 0.0
        %306 = vmatmul.mubr.f32.gmra.mxu0 %v230
        %v307 = vpop.f32.mrf.mxu0
        %v308 = vadd.f32 0.0, %v307
        %v309 = vpop.f32.mrf.mxu0
        %310 = vmatprep.mubr.f32.mxu0 0.0
        %311 = vmatmul.mubr.f32.gmra.mxu0 %v233
        %v312 = vpop.f32.mrf.mxu0
        %v313 = vadd.f32 0.0, %v312
        %v314 = vpop.f32.mrf.mxu0
        %315 = vmatprep.mubr.f32.mxu0 0.0
        %316 = vmatmul.mubr.f32.gmra.mxu0 %v236
        %v317 = vpop.f32.mrf.mxu0
        %v318 = vadd.f32 0.0, %v317
        %v319 = vpop.f32.mrf.mxu0
        %320 = vmatprep.mubr.f32.mxu0 0.0
        %321 = vmatmul.mubr.f32.gmra.mxu0 %v239
        %v322 = vpop.f32.mrf.mxu0
        %v323 = vadd.f32 0.0, %v322
        %v324 = vpop.f32.mrf.mxu0
        %325 = vdwg.mxu0
        %v327 = vsel %vm228, %v217, 0
        %v330 = vsel %vm228, %v218, 0
        %v333 = vsel %vm228, %v219, 0
        %v336 = vsel %vm228, %v220, 0
        %338 = vmatprep.subr.mxu0 0.0
        %339 = vmatpush1.msra.mxu0 0.0
        %340 = vmatprep.subr.mxu0 0.0
        %341 = vmatpush1.msra.mxu0 0.0
        %342 = vmatprep.subr.mxu0 0.0
        %343 = vmatpush1.msra.mxu0 0.0
        %344 = vmatprep.subr.mxu0 0.0
        %345 = vmatpush1.msra.mxu0 0.0
        %346 = vmatprep.subr.mxu0 0.0
        %347 = vmatpush1.msra.mxu0 0.0
        %348 = vmatprep.subr.mxu0 0.0
        %349 = vmatpush1.msra.mxu0 0.0
        %350 = vmatprep.subr.mxu0 0.0
        %351 = vmatpush1.msra.mxu0 0.0
        %352 = vmatprep.subr.mxu0 0.0
        %353 = vmatpush1.msra.mxu0 0.0
        %354 = vmatprep.subr.mxu0 0.0
        %355 = vmatpush1.msra.mxu0 0.0
        %356 = vmatprep.subr.mxu0 0.0
        %357 = vmatpush1.msra.mxu0 0.0
        %358 = vmatprep.subr.mxu0 0.0
        %359 = vmatpush1.msra.mxu0 0.0
        %360 = vmatprep.subr.mxu0 0.0
        %361 = vmatpush1.msra.mxu0 0.0
        %362 = vmatprep.subr.mxu0 0.0
        %363 = vmatpush1.msra.mxu0 0.0
        %364 = vmatprep.subr.mxu0 0.0
        %365 = vmatpush1.msra.mxu0 0.0
        %366 = vmatprep.subr.mxu0 0.0
        %367 = vmatpush1.msra.mxu0 0.0
        %368 = vmatprep.subr.mxu0 0.0
        %369 = vmatpush1.msra.mxu0 %v226
        %370 = vmatprep.subr.mxu0 0.0
        %371 = vmatpush2.msra.mxu0 0.0
        %372 = vmatprep.subr.mxu0 0.0
        %373 = vmatpush2.msra.mxu0 0.0
        %374 = vmatprep.subr.mxu0 0.0
        %375 = vmatpush2.msra.mxu0 0.0
        %376 = vmatprep.subr.mxu0 0.0
        %377 = vmatpush2.msra.mxu0 0.0
        %378 = vmatprep.subr.mxu0 0.0
        %379 = vmatpush2.msra.mxu0 0.0
        %380 = vmatprep.subr.mxu0 0.0
        %381 = vmatpush2.msra.mxu0 0.0
        %382 = vmatprep.subr.mxu0 0.0
        %383 = vmatpush2.msra.mxu0 0.0
        %384 = vmatprep.subr.mxu0 0.0
        %385 = vmatpush2.msra.mxu0 0.0
        %386 = vmatprep.subr.mxu0 0.0
        %387 = vmatpush2.msra.mxu0 0.0
        %388 = vmatprep.subr.mxu0 0.0
        %389 = vmatpush2.msra.mxu0 0.0
        %390 = vmatprep.subr.mxu0 0.0
        %391 = vmatpush2.msra.mxu0 0.0
        %392 = vmatprep.subr.mxu0 0.0
        %393 = vmatpush2.msra.mxu0 0.0
        %394 = vmatprep.subr.mxu0 0.0
        %395 = vmatpush2.msra.mxu0 0.0
        %396 = vmatprep.subr.mxu0 0.0
        %397 = vmatpush2.msra.mxu0 0.0
        %398 = vmatprep.subr.mxu0 0.0
        %399 = vmatpush2.msra.mxu0 0.0
        %400 = vmatprep.subr.mxu0 0.0
        %401 = vmatpush2.msra.mxu0 0.0
        %402 = vmatprep.mubr.f32.mxu0 0.0
        %403 = vmatmul.mubr.f32.gmra.mxu0 %v327
        %v404 = vpop.f32.mrf.mxu0
        %v405 = vadd.f32 0.0, %v404
        %v406 = vpop.f32.mrf.mxu0
        %407 = vmatprep.mubr.f32.mxu0 0.0
        %408 = vmatmul.mubr.f32.gmra.mxu0 %v330
        %v409 = vpop.f32.mrf.mxu0
        %v410 = vadd.f32 0.0, %v409
        %v411 = vpop.f32.mrf.mxu0
        %412 = vmatprep.mubr.f32.mxu0 0.0
        %413 = vmatmul.mubr.f32.gmra.mxu0 %v333
        %v414 = vpop.f32.mrf.mxu0
        %v415 = vadd.f32 0.0, %v414
        %v416 = vpop.f32.mrf.mxu0
        %417 = vmatprep.mubr.f32.mxu0 0.0
        %418 = vmatmul.mubr.f32.gmra.mxu0 %v336
        %v419 = vpop.f32.mrf.mxu0
        %v420 = vadd.f32 0.0, %v419
        %v421 = vpop.f32.mrf.mxu0
        %422 = vdwg.mxu0
        %v424 = vsel %vm228, %v221, 0
        %v427 = vsel %vm228, %v222, 0
        %v430 = vsel %vm228, %v223, 0
        %v433 = vsel %vm228, %v224, 0
        %435 = vmatprep.subr.mxu0 0.0
        %436 = vmatpush1.msra.mxu0 0.0
        %437 = vmatprep.subr.mxu0 0.0
        %438 = vmatpush1.msra.mxu0 0.0
        %439 = vmatprep.subr.mxu0 0.0
        %440 = vmatpush1.msra.mxu0 0.0
        %441 = vmatprep.subr.mxu0 0.0
        %442 = vmatpush1.msra.mxu0 0.0
        %443 = vmatprep.subr.mxu0 0.0
        %444 = vmatpush1.msra.mxu0 0.0
        %445 = vmatprep.subr.mxu0 0.0
        %446 = vmatpush1.msra.mxu0 0.0
        %447 = vmatprep.subr.mxu0 0.0
        %448 = vmatpush1.msra.mxu0 0.0
        %449 = vmatprep.subr.mxu0 0.0
        %450 = vmatpush1.msra.mxu0 0.0
        %451 = vmatprep.subr.mxu0 0.0
        %452 = vmatpush1.msra.mxu0 0.0
        %453 = vmatprep.subr.mxu0 0.0
        %454 = vmatpush1.msra.mxu0 0.0
        %455 = vmatprep.subr.mxu0 0.0
        %456 = vmatpush1.msra.mxu0 0.0
        %457 = vmatprep.subr.mxu0 0.0
        %458 = vmatpush1.msra.mxu0 0.0
        %459 = vmatprep.subr.mxu0 0.0
        %460 = vmatpush1.msra.mxu0 0.0
        %461 = vmatprep.subr.mxu0 0.0
        %462 = vmatpush1.msra.mxu0 0.0
        %463 = vmatprep.subr.mxu0 0.0
        %464 = vmatpush1.msra.mxu0 0.0
        %465 = vmatprep.subr.mxu0 0.0
        %466 = vmatpush1.msra.mxu0 %v227
        %467 = vmatprep.subr.mxu0 0.0
        %468 = vmatpush2.msra.mxu0 0.0
        %469 = vmatprep.subr.mxu0 0.0
        %470 = vmatpush2.msra.mxu0 0.0
        %471 = vmatprep.subr.mxu0 0.0
        %472 = vmatpush2.msra.mxu0 0.0
        %473 = vmatprep.subr.mxu0 0.0
        %474 = vmatpush2.msra.mxu0 0.0
        %475 = vmatprep.subr.mxu0 0.0
        %476 = vmatpush2.msra.mxu0 0.0
        %477 = vmatprep.subr.mxu0 0.0
        %478 = vmatpush2.msra.mxu0 0.0
        %479 = vmatprep.subr.mxu0 0.0
        %480 = vmatpush2.msra.mxu0 0.0
        %481 = vmatprep.subr.mxu0 0.0
        %482 = vmatpush2.msra.mxu0 0.0
        %483 = vmatprep.subr.mxu0 0.0
        %484 = vmatpush2.msra.mxu0 0.0
        %485 = vmatprep.subr.mxu0 0.0
        %486 = vmatpush2.msra.mxu0 0.0
        %487 = vmatprep.subr.mxu0 0.0
        %488 = vmatpush2.msra.mxu0 0.0
        %489 = vmatprep.subr.mxu0 0.0
        %490 = vmatpush2.msra.mxu0 0.0
        %491 = vmatprep.subr.mxu0 0.0
        %492 = vmatpush2.msra.mxu0 0.0
        %493 = vmatprep.subr.mxu0 0.0
        %494 = vmatpush2.msra.mxu0 0.0
        %495 = vmatprep.subr.mxu0 0.0
        %496 = vmatpush2.msra.mxu0 0.0
        %497 = vmatprep.subr.mxu0 0.0
        %498 = vmatpush2.msra.mxu0 0.0
        %499 = vmatprep.mubr.f32.mxu0 0.0
        %500 = vmatmul.mubr.f32.gmra.mxu0 %v424
        %v501 = vpop.f32.mrf.mxu0
        %v502 = vadd.f32 0.0, %v501
        %v503 = vpop.f32.mrf.mxu0
        %504 = vmatprep.mubr.f32.mxu0 0.0
        %505 = vmatmul.mubr.f32.gmra.mxu0 %v427
        %v506 = vpop.f32.mrf.mxu0
        %v507 = vadd.f32 0.0, %v506
        %v508 = vpop.f32.mrf.mxu0
        %509 = vmatprep.mubr.f32.mxu0 0.0
        %510 = vmatmul.mubr.f32.gmra.mxu0 %v430
        %v511 = vpop.f32.mrf.mxu0
        %v512 = vadd.f32 0.0, %v511
        %v513 = vpop.f32.mrf.mxu0
        %514 = vmatprep.mubr.f32.mxu0 0.0
        %515 = vmatmul.mubr.f32.gmra.mxu0 %v433
        %v516 = vpop.f32.mrf.mxu0
        %v517 = vadd.f32 0.0, %v516
        %v518 = vpop.f32.mrf.mxu0
        %519 = vdwg.mxu0
        %v521 = vsel %vm228, %v308, 0
        %v524 = vsel %vm228, %v313, 0
        %v527 = vsel %vm228, %v318, 0
        %v530 = vsel %vm228, %v323, 0
        %v533 = vsel %vm228, %v405, 0
        %v536 = vsel %vm228, %v410, 0
        %v539 = vsel %vm228, %v415, 0
        %v542 = vsel %vm228, %v420, 0
        %544 = vmatprep.subr.mxu0 0.0
        %545 = vmatpush1.xpose.msra.mxu0 0.0
        %546 = vmatprep.subr.mxu0 0.0
        %547 = vmatpush1.xpose.msra.mxu0 0.0
        %548 = vmatprep.subr.mxu0 0.0
        %549 = vmatpush1.xpose.msra.mxu0 0.0
        %550 = vmatprep.subr.mxu0 0.0
        %551 = vmatpush1.xpose.msra.mxu0 0.0
        %552 = vmatprep.subr.mxu0 0.0
        %553 = vmatpush1.xpose.msra.mxu0 0.0
        %554 = vmatprep.subr.mxu0 0.0
        %555 = vmatpush1.xpose.msra.mxu0 0.0
        %556 = vmatprep.subr.mxu0 0.0
        %557 = vmatpush1.xpose.msra.mxu0 0.0
        %558 = vmatprep.subr.mxu0 0.0
        %559 = vmatpush1.xpose.msra.mxu0 0.0
        %560 = vmatprep.subr.mxu0 0.0
        %561 = vmatpush1.xpose.msra.mxu0 0.0
        %562 = vmatprep.subr.mxu0 0.0
        %563 = vmatpush1.xpose.msra.mxu0 0.0
        %564 = vmatprep.subr.mxu0 0.0
        %565 = vmatpush1.xpose.msra.mxu0 0.0
        %566 = vmatprep.subr.mxu0 0.0
        %567 = vmatpush1.xpose.msra.mxu0 0.0
        %568 = vmatprep.subr.mxu0 0.0
        %569 = vmatpush1.xpose.msra.mxu0 %v542
        %570 = vmatprep.subr.mxu0 0.0
        %571 = vmatpush1.xpose.msra.mxu0 %v539
        %572 = vmatprep.subr.mxu0 0.0
        %573 = vmatpush1.xpose.msra.mxu0 %v536
        %574 = vmatprep.subr.mxu0 0.0
        %575 = vmatpush1.xpose.msra.mxu0 %v533
        %576 = vmatprep.subr.mxu0 0.0
        %577 = vmatpush2.xpose.msra.mxu0 0.0
        %578 = vmatprep.subr.mxu0 0.0
        %579 = vmatpush2.xpose.msra.mxu0 0.0
        %580 = vmatprep.subr.mxu0 0.0
        %581 = vmatpush2.xpose.msra.mxu0 0.0
        %582 = vmatprep.subr.mxu0 0.0
        %583 = vmatpush2.xpose.msra.mxu0 0.0
        %584 = vmatprep.subr.mxu0 0.0
        %585 = vmatpush2.xpose.msra.mxu0 0.0
        %586 = vmatprep.subr.mxu0 0.0
        %587 = vmatpush2.xpose.msra.mxu0 0.0
        %588 = vmatprep.subr.mxu0 0.0
        %589 = vmatpush2.xpose.msra.mxu0 0.0
        %590 = vmatprep.subr.mxu0 0.0
        %591 = vmatpush2.xpose.msra.mxu0 0.0
        %592 = vmatprep.subr.mxu0 0.0
        %593 = vmatpush2.xpose.msra.mxu0 0.0
        %594 = vmatprep.subr.mxu0 0.0
        %595 = vmatpush2.xpose.msra.mxu0 0.0
        %596 = vmatprep.subr.mxu0 0.0
        %597 = vmatpush2.xpose.msra.mxu0 0.0
        %598 = vmatprep.subr.mxu0 0.0
        %599 = vmatpush2.xpose.msra.mxu0 0.0
        %600 = vmatprep.subr.mxu0 0.0
        %601 = vmatpush2.xpose.msra.mxu0 0.0
        %602 = vmatprep.subr.mxu0 0.0
        %603 = vmatpush2.xpose.msra.mxu0 0.0
        %604 = vmatprep.subr.mxu0 0.0
        %605 = vmatpush2.xpose.msra.mxu0 0.0
        %606 = vmatprep.subr.mxu0 0.0
        %607 = vmatpush2.xpose.msra.mxu0 0.0
        %608 = vmatprep.mubr.f32.mxu0 0.0
        %609 = vmatmul.mubr.f32.gmra.mxu0 %v521
        %v610 = vpop.f32.mrf.mxu0
        %v611 = vadd.f32 0.0, %v610
        %v612 = vpop.f32.mrf.mxu0
        %613 = vmatprep.mubr.f32.mxu0 0.0
        %614 = vmatmul.mubr.f32.gmra.mxu0 %v524
        %v615 = vpop.f32.mrf.mxu0
        %v616 = vadd.f32 0.0, %v615
        %v617 = vpop.f32.mrf.mxu0
        %618 = vmatprep.mubr.f32.mxu0 0.0
        %619 = vmatmul.mubr.f32.gmra.mxu0 %v527
        %v620 = vpop.f32.mrf.mxu0
        %v621 = vadd.f32 0.0, %v620
        %v622 = vpop.f32.mrf.mxu0
        %623 = vmatprep.mubr.f32.mxu0 0.0
        %624 = vmatmul.mubr.f32.gmra.mxu0 %v530
        %v625 = vpop.f32.mrf.mxu0
        %v626 = vadd.f32 0.0, %v625
        %v627 = vpop.f32.mrf.mxu0
        %628 = vdwg.mxu0
        %v629 = vmul.f32 %v611, 0.35355338
        %v630 = vmul.f32 %v616, 0.35355338
        %v631 = vmul.f32 %v621, 0.35355338
        %v632 = vmul.f32 %v626, 0.35355338
        %v633 = vld [vmem:[%s3 + $0x60] sm:$0xff]
        %v634 = vld [vmem:[%s3 + $0x68] sm:$0xff]
        %v635 = vld [vmem:[%s3 + $0x70] sm:$0xff]
        %v636 = vld [vmem:[%s3 + $0x78] sm:$0xff]
        %v637 = vadd.f32 %v629, %v633
        %v638 = vadd.f32 %v630, %v634
        %v639 = vadd.f32 %v631, %v635
        %v640 = vadd.f32 %v632, %v636
        %vm641 = vcmask 261120
        %v642 = vsel %vm641, %v637, -inf
        %643 = vmax.xlane.f32.xlu0 %v642
        %v644 = vpop.xlane.xlu0 %643
        %v645 = vsel %vm641, %v638, -inf
        %646 = vmax.xlane.f32.xlu0 %v645
        %v647 = vpop.xlane.xlu0 %646
        %v648 = vsel %vm641, %v639, -inf
        %649 = vmax.xlane.f32.xlu0 %v648
        %v650 = vpop.xlane.xlu0 %649
        %v651 = vsel %vm641, %v640, -inf
        %652 = vmax.xlane.f32.xlu0 %v651
        %v653 = vpop.xlane.xlu0 %652
        %v654 = vsub.f32 %v637, %v644
        %v655 = vsub.f32 %v638, %v647
        %v656 = vsub.f32 %v639, %v650
        %v657 = vsub.f32 %v640, %v653
        %v658 = vmul.f32 %v654, 1.442695
        %v659 = vpow.pop %v658
        %v660 = vmul.f32 %v655, 1.442695
        %v661 = vpow.pop %v660
        %v662 = vmul.f32 %v656, 1.442695
        %v663 = vpow.pop %v662
        %v664 = vmul.f32 %v657, 1.442695
        %v665 = vpow.pop %v664
        %v666 = vsel %vm641, %v659, 0.0
        %667 = vadd.xlane.f32.xlu0 %v666
        %v668 = vpop.xlane.xlu0 %667
        %v669 = vsel %vm641, %v661, 0.0
        %670 = vadd.xlane.f32.xlu0 %v669
        %v671 = vpop.xlane.xlu0 %670
        %v672 = vsel %vm641, %v663, 0.0
        %673 = vadd.xlane.f32.xlu0 %v672
        %v674 = vpop.xlane.xlu0 %673
        %v675 = vsel %vm641, %v665, 0.0
        %676 = vadd.xlane.f32.xlu0 %v675
        %v677 = vpop.xlane.xlu0 %676
        %v678 = vrcp.pop %v668
        %v679 = vmul.f32 %v659, %v678
        %v680 = vrcp.pop %v671
        %v681 = vmul.f32 %v661, %v680
        %v682 = vrcp.pop %v674
        %v683 = vmul.f32 %v663, %v682
        %v684 = vrcp.pop %v677
        %v685 = vmul.f32 %v665, %v684
        %v687 = vsel %vm641, %v679, 0
        %v690 = vsel %vm641, %v681, 0
        %v693 = vsel %vm641, %v683, 0
        %v696 = vsel %vm641, %v685, 0
        %698 = vmatprep.subr.mxu0 0.0
        %699 = vmatpush1.msra.mxu0 0.0
        %700 = vmatprep.subr.mxu0 0.0
        %701 = vmatpush1.msra.mxu0 0.0
        %702 = vmatprep.subr.mxu0 0.0
        %703 = vmatpush1.msra.mxu0 0.0
        %704 = vmatprep.subr.mxu0 0.0
        %705 = vmatpush1.msra.mxu0 0.0
        %706 = vmatprep.subr.mxu0 0.0
        %707 = vmatpush1.msra.mxu0 0.0
        %708 = vmatprep.subr.mxu0 0.0
        %709 = vmatpush1.msra.mxu0 0.0
        %710 = vmatprep.subr.mxu0 0.0
        %711 = vmatpush1.msra.mxu0 0.0
        %712 = vmatprep.subr.mxu0 0.0
        %713 = vmatpush1.msra.mxu0 0.0
        %714 = vmatprep.subr.mxu0 0.0
        %715 = vmatpush1.msra.mxu0 0.0
        %716 = vmatprep.subr.mxu0 0.0
        %717 = vmatpush1.msra.mxu0 0.0
        %718 = vmatprep.subr.mxu0 0.0
        %719 = vmatpush1.msra.mxu0 0.0
        %720 = vmatprep.subr.mxu0 0.0
        %721 = vmatpush1.msra.mxu0 0.0
        %722 = vmatprep.subr.mxu0 0.0
        %723 = vmatpush1.msra.mxu0 %v517
        %724 = vmatprep.subr.mxu0 0.0
        %725 = vmatpush1.msra.mxu0 %v512
        %726 = vmatprep.subr.mxu0 0.0
        %727 = vmatpush1.msra.mxu0 %v507
        %728 = vmatprep.subr.mxu0 0.0
        %729 = vmatpush1.msra.mxu0 %v502
        %730 = vmatprep.subr.mxu0 0.0
        %731 = vmatpush2.msra.mxu0 0.0
        %732 = vmatprep.subr.mxu0 0.0
        %733 = vmatpush2.msra.mxu0 0.0
        %734 = vmatprep.subr.mxu0 0.0
        %735 = vmatpush2.msra.mxu0 0.0
        %736 = vmatprep.subr.mxu0 0.0
        %737 = vmatpush2.msra.mxu0 0.0
        %738 = vmatprep.subr.mxu0 0.0
        %739 = vmatpush2.msra.mxu0 0.0
        %740 = vmatprep.subr.mxu0 0.0
        %741 = vmatpush2.msra.mxu0 0.0
        %742 = vmatprep.subr.mxu0 0.0
        %743 = vmatpush2.msra.mxu0 0.0
        %744 = vmatprep.subr.mxu0 0.0
        %745 = vmatpush2.msra.mxu0 0.0
        %746 = vmatprep.subr.mxu0 0.0
        %747 = vmatpush2.msra.mxu0 0.0
        %748 = vmatprep.subr.mxu0 0.0
        %749 = vmatpush2.msra.mxu0 0.0
        %750 = vmatprep.subr.mxu0 0.0
        %751 = vmatpush2.msra.mxu0 0.0
        %752 = vmatprep.subr.mxu0 0.0
        %753 = vmatpush2.msra.mxu0 0.0
        %754 = vmatprep.subr.mxu0 0.0
        %755 = vmatpush2.msra.mxu0 0.0
        %756 = vmatprep.subr.mxu0 0.0
        %757 = vmatpush2.msra.mxu0 0.0
        %758 = vmatprep.subr.mxu0 0.0
        %759 = vmatpush2.msra.mxu0 0.0
        %760 = vmatprep.subr.mxu0 0.0
        %761 = vmatpush2.msra.mxu0 0.0
        %762 = vmatprep.mubr.f32.mxu0 0.0
        %763 = vmatmul.mubr.f32.gmra.mxu0 %v687
        %v764 = vpop.f32.mrf.mxu0
        %v765 = vadd.f32 0.0, %v764
        %v766 = vpop.f32.mrf.mxu0
        %767 = vmatprep.mubr.f32.mxu0 0.0
        %768 = vmatmul.mubr.f32.gmra.mxu0 %v690
        %v769 = vpop.f32.mrf.mxu0
        %v770 = vadd.f32 0.0, %v769
        %v771 = vpop.f32.mrf.mxu0
        %772 = vmatprep.mubr.f32.mxu0 0.0
        %773 = vmatmul.mubr.f32.gmra.mxu0 %v693
        %v774 = vpop.f32.mrf.mxu0
        %v775 = vadd.f32 0.0, %v774
        %v776 = vpop.f32.mrf.mxu0
        %777 = vmatprep.mubr.f32.mxu0 0.0
        %778 = vmatmul.mubr.f32.gmra.mxu0 %v696
        %v779 = vpop.f32.mrf.mxu0
        %v780 = vadd.f32 0.0, %v779
        %v781 = vpop.f32.mrf.mxu0
        %782 = vdwg.mxu0
        %v783 = vld [vmem:[%s3 + $0x80] sm:$0xff]
        %v784 = vld [vmem:[%s3 + $0x40] sm:$0xff]
        %v785 = vld [vmem:[%s3 + $0x48] sm:$0xff]
        %v786 = vld [vmem:[%s3 + $0x50] sm:$0xff]
        %v787 = vld [vmem:[%s3 + $0x58] sm:$0xff]
        %v788 = vld [vmem:[%s212] sm:$0xff]
        %v789 = vlaneseq
        %v790 = vshrl.u32 %v789, 7
        %v791 = vsub.s32 1, %v790
        %v792 = vrot.slane %v783, %v791
        %v793 = vadd.f32 %v788, %v792
        %v795 = vsel %vm228, %v765, 0
        %797 = vmatprep.subr.mxu0 0.0
        %798 = vmatpush1.msra.mxu0 0.0
        %799 = vmatprep.subr.mxu0 0.0
        %800 = vmatpush1.msra.mxu0 0.0
        %801 = vmatprep.subr.mxu0 0.0
        %802 = vmatpush1.msra.mxu0 0.0
        %803 = vmatprep.subr.mxu0 0.0
        %804 = vmatpush1.msra.mxu0 0.0
        %805 = vmatprep.subr.mxu0 0.0
        %806 = vmatpush1.msra.mxu0 0.0
        %807 = vmatprep.subr.mxu0 0.0
        %808 = vmatpush1.msra.mxu0 0.0
        %809 = vmatprep.subr.mxu0 0.0
        %810 = vmatpush1.msra.mxu0 0.0
        %811 = vmatprep.subr.mxu0 0.0
        %812 = vmatpush1.msra.mxu0 0.0
        %813 = vmatprep.subr.mxu0 0.0
        %814 = vmatpush1.msra.mxu0 0.0
        %815 = vmatprep.subr.mxu0 0.0
        %816 = vmatpush1.msra.mxu0 0.0
        %817 = vmatprep.subr.mxu0 0.0
        %818 = vmatpush1.msra.mxu0 0.0
        %819 = vmatprep.subr.mxu0 0.0
        %820 = vmatpush1.msra.mxu0 0.0
        %821 = vmatprep.subr.mxu0 0.0
        %822 = vmatpush1.msra.mxu0 0.0
        %823 = vmatprep.subr.mxu0 0.0
        %824 = vmatpush1.msra.mxu0 0.0
        %825 = vmatprep.subr.mxu0 0.0
        %826 = vmatpush1.msra.mxu0 0.0
        %827 = vmatprep.subr.mxu0 0.0
        %828 = vmatpush1.msra.mxu0 %v784
        %829 = vmatprep.subr.mxu0 0.0
        %830 = vmatpush2.msra.mxu0 0.0
        %831 = vmatprep.subr.mxu0 0.0
        %832 = vmatpush2.msra.mxu0 0.0
        %833 = vmatprep.subr.mxu0 0.0
        %834 = vmatpush2.msra.mxu0 0.0
        %835 = vmatprep.subr.mxu0 0.0
        %836 = vmatpush2.msra.mxu0 0.0
        %837 = vmatprep.subr.mxu0 0.0
        %838 = vmatpush2.msra.mxu0 0.0
        %839 = vmatprep.subr.mxu0 0.0
        %840 = vmatpush2.msra.mxu0 0.0
        %841 = vmatprep.subr.mxu0 0.0
        %842 = vmatpush2.msra.mxu0 0.0
        %843 = vmatprep.subr.mxu0 0.0
        %844 = vmatpush2.msra.mxu0 0.0
        %845 = vmatprep.subr.mxu0 0.0
        %846 = vmatpush2.msra.mxu0 0.0
        %847 = vmatprep.subr.mxu0 0.0
        %848 = vmatpush2.msra.mxu0 0.0
        %849 = vmatprep.subr.mxu0 0.0
        %850 = vmatpush2.msra.mxu0 0.0
        %851 = vmatprep.subr.mxu0 0.0
        %852 = vmatpush2.msra.mxu0 0.0
        %853 = vmatprep.subr.mxu0 0.0
        %854 = vmatpush2.msra.mxu0 0.0
        %855 = vmatprep.subr.mxu0 0.0
        %856 = vmatpush2.msra.mxu0 0.0
        %857 = vmatprep.subr.mxu0 0.0
        %858 = vmatpush2.msra.mxu0 0.0
        %859 = vmatprep.subr.mxu0 0.0
        %860 = vmatpush2.msra.mxu0 0.0
        %861 = vmatprep.mubr.f32.mxu0 0.0
        %862 = vmatmul.mubr.f32.gmra.mxu0 %v795
        %v863 = vpop.f32.mrf.mxu0
        %v864 = vadd.f32 0.0, %v863
        %v865 = vpop.f32.mrf.mxu0
        %866 = vdwg.mxu0
        %v867 = vadd.f32 %v793, %v864
        %v869 = vsel %vm228, %v770, 0
        %871 = vmatprep.subr.mxu0 0.0
        %872 = vmatpush1.msra.mxu0 0.0
        %873 = vmatprep.subr.mxu0 0.0
        %874 = vmatpush1.msra.mxu0 0.0
        %875 = vmatprep.subr.mxu0 0.0
        %876 = vmatpush1.msra.mxu0 0.0
        %877 = vmatprep.subr.mxu0 0.0
        %878 = vmatpush1.msra.mxu0 0.0
        %879 = vmatprep.subr.mxu0 0.0
        %880 = vmatpush1.msra.mxu0 0.0
        %881 = vmatprep.subr.mxu0 0.0
        %882 = vmatpush1.msra.mxu0 0.0
        %883 = vmatprep.subr.mxu0 0.0
        %884 = vmatpush1.msra.mxu0 0.0
        %885 = vmatprep.subr.mxu0 0.0
        %886 = vmatpush1.msra.mxu0 0.0
        %887 = vmatprep.subr.mxu0 0.0
        %888 = vmatpush1.msra.mxu0 0.0
        %889 = vmatprep.subr.mxu0 0.0
        %890 = vmatpush1.msra.mxu0 0.0
        %891 = vmatprep.subr.mxu0 0.0
        %892 = vmatpush1.msra.mxu0 0.0
        %893 = vmatprep.subr.mxu0 0.0
        %894 = vmatpush1.msra.mxu0 0.0
        %895 = vmatprep.subr.mxu0 0.0
        %896 = vmatpush1.msra.mxu0 0.0
        %897 = vmatprep.subr.mxu0 0.0
        %898 = vmatpush1.msra.mxu0 0.0
        %899 = vmatprep.subr.mxu0 0.0
        %900 = vmatpush1.msra.mxu0 0.0
        %901 = vmatprep.subr.mxu0 0.0
        %902 = vmatpush1.msra.mxu0 %v785
        %903 = vmatprep.subr.mxu0 0.0
        %904 = vmatpush2.msra.mxu0 0.0
        %905 = vmatprep.subr.mxu0 0.0
        %906 = vmatpush2.msra.mxu0 0.0
        %907 = vmatprep.subr.mxu0 0.0
        %908 = vmatpush2.msra.mxu0 0.0
        %909 = vmatprep.subr.mxu0 0.0
        %910 = vmatpush2.msra.mxu0 0.0
        %911 = vmatprep.subr.mxu0 0.0
        %912 = vmatpush2.msra.mxu0 0.0
        %913 = vmatprep.subr.mxu0 0.0
        %914 = vmatpush2.msra.mxu0 0.0
        %915 = vmatprep.subr.mxu0 0.0
        %916 = vmatpush2.msra.mxu0 0.0
        %917 = vmatprep.subr.mxu0 0.0
        %918 = vmatpush2.msra.mxu0 0.0
        %919 = vmatprep.subr.mxu0 0.0
        %920 = vmatpush2.msra.mxu0 0.0
        %921 = vmatprep.subr.mxu0 0.0
        %922 = vmatpush2.msra.mxu0 0.0
        %923 = vmatprep.subr.mxu0 0.0
        %924 = vmatpush2.msra.mxu0 0.0
        %925 = vmatprep.subr.mxu0 0.0
        %926 = vmatpush2.msra.mxu0 0.0
        %927 = vmatprep.subr.mxu0 0.0
        %928 = vmatpush2.msra.mxu0 0.0
        %929 = vmatprep.subr.mxu0 0.0
        %930 = vmatpush2.msra.mxu0 0.0
        %931 = vmatprep.subr.mxu0 0.0
        %932 = vmatpush2.msra.mxu0 0.0
        %933 = vmatprep.subr.mxu0 0.0
        %934 = vmatpush2.msra.mxu0 0.0
        %935 = vmatprep.mubr.f32.mxu0 0.0
        %936 = vmatmul.mubr.f32.gmra.mxu0 %v869
        %v937 = vpop.f32.mrf.mxu0
        %v938 = vadd.f32 0.0, %v937
        %v939 = vpop.f32.mrf.mxu0
        %940 = vdwg.mxu0
        %v941 = vadd.f32 %v867, %v938
        %v943 = vsel %vm228, %v775, 0
        %945 = vmatprep.subr.mxu0 0.0
        %946 = vmatpush1.msra.mxu0 0.0
        %947 = vmatprep.subr.mxu0 0.0
        %948 = vmatpush1.msra.mxu0 0.0
        %949 = vmatprep.subr.mxu0 0.0
        %950 = vmatpush1.msra.mxu0 0.0
        %951 = vmatprep.subr.mxu0 0.0
        %952 = vmatpush1.msra.mxu0 0.0
        %953 = vmatprep.subr.mxu0 0.0
        %954 = vmatpush1.msra.mxu0 0.0
        %955 = vmatprep.subr.mxu0 0.0
        %956 = vmatpush1.msra.mxu0 0.0
        %957 = vmatprep.subr.mxu0 0.0
        %958 = vmatpush1.msra.mxu0 0.0
        %959 = vmatprep.subr.mxu0 0.0
        %960 = vmatpush1.msra.mxu0 0.0
        %961 = vmatprep.subr.mxu0 0.0
        %962 = vmatpush1.msra.mxu0 0.0
        %963 = vmatprep.subr.mxu0 0.0
        %964 = vmatpush1.msra.mxu0 0.0
        %965 = vmatprep.subr.mxu0 0.0
        %966 = vmatpush1.msra.mxu0 0.0
        %967 = vmatprep.subr.mxu0 0.0
        %968 = vmatpush1.msra.mxu0 0.0
        %969 = vmatprep.subr.mxu0 0.0
        %970 = vmatpush1.msra.mxu0 0.0
        %971 = vmatprep.subr.mxu0 0.0
        %972 = vmatpush1.msra.mxu0 0.0
        %973 = vmatprep.subr.mxu0 0.0
        %974 = vmatpush1.msra.mxu0 0.0
        %975 = vmatprep.subr.mxu0 0.0
        %976 = vmatpush1.msra.mxu0 %v786
        %977 = vmatprep.subr.mxu0 0.0
        %978 = vmatpush2.msra.mxu0 0.0
        %979 = vmatprep.subr.mxu0 0.0
        %980 = vmatpush2.msra.mxu0 0.0
        %981 = vmatprep.subr.mxu0 0.0
        %982 = vmatpush2.msra.mxu0 0.0
        %983 = vmatprep.subr.mxu0 0.0
        %984 = vmatpush2.msra.mxu0 0.0
        %985 = vmatprep.subr.mxu0 0.0
        %986 = vmatpush2.msra.mxu0 0.0
        %987 = vmatprep.subr.mxu0 0.0
        %988 = vmatpush2.msra.mxu0 0.0
        %989 = vmatprep.subr.mxu0 0.0
        %990 = vmatpush2.msra.mxu0 0.0
        %991 = vmatprep.subr.mxu0 0.0
        %992 = vmatpush2.msra.mxu0 0.0
        %993 = vmatprep.subr.mxu0 0.0
        %994 = vmatpush2.msra.mxu0 0.0
        %995 = vmatprep.subr.mxu0 0.0
        %996 = vmatpush2.msra.mxu0 0.0
        %997 = vmatprep.subr.mxu0 0.0
        %998 = vmatpush2.msra.mxu0 0.0
        %999 = vmatprep.subr.mxu0 0.0
        %1000 = vmatpush2.msra.mxu0 0.0
        %1001 = vmatprep.subr.mxu0 0.0
        %1002 = vmatpush2.msra.mxu0 0.0
        %1003 = vmatprep.subr.mxu0 0.0
        %1004 = vmatpush2.msra.mxu0 0.0
        %1005 = vmatprep.subr.mxu0 0.0
        %1006 = vmatpush2.msra.mxu0 0.0
        %1007 = vmatprep.subr.mxu0 0.0
        %1008 = vmatpush2.msra.mxu0 0.0
        %1009 = vmatprep.mubr.f32.mxu0 0.0
        %1010 = vmatmul.mubr.f32.gmra.mxu0 %v943
        %v1011 = vpop.f32.mrf.mxu0
        %v1012 = vadd.f32 0.0, %v1011
        %v1013 = vpop.f32.mrf.mxu0
        %1014 = vdwg.mxu0
        %v1015 = vadd.f32 %v941, %v1012
        %v1017 = vsel %vm228, %v780, 0
        %1019 = vmatprep.subr.mxu0 0.0
        %1020 = vmatpush1.msra.mxu0 0.0
        %1021 = vmatprep.subr.mxu0 0.0
        %1022 = vmatpush1.msra.mxu0 0.0
        %1023 = vmatprep.subr.mxu0 0.0
        %1024 = vmatpush1.msra.mxu0 0.0
        %1025 = vmatprep.subr.mxu0 0.0
        %1026 = vmatpush1.msra.mxu0 0.0
        %1027 = vmatprep.subr.mxu0 0.0
        %1028 = vmatpush1.msra.mxu0 0.0
        %1029 = vmatprep.subr.mxu0 0.0
        %1030 = vmatpush1.msra.mxu0 0.0
        %1031 = vmatprep.subr.mxu0 0.0
        %1032 = vmatpush1.msra.mxu0 0.0
        %1033 = vmatprep.subr.mxu0 0.0
        %1034 = vmatpush1.msra.mxu0 0.0
        %1035 = vmatprep.subr.mxu0 0.0
        %1036 = vmatpush1.msra.mxu0 0.0
        %1037 = vmatprep.subr.mxu0 0.0
        %1038 = vmatpush1.msra.mxu0 0.0
        %1039 = vmatprep.subr.mxu0 0.0
        %1040 = vmatpush1.msra.mxu0 0.0
        %1041 = vmatprep.subr.mxu0 0.0
        %1042 = vmatpush1.msra.mxu0 0.0
        %1043 = vmatprep.subr.mxu0 0.0
        %1044 = vmatpush1.msra.mxu0 0.0
        %1045 = vmatprep.subr.mxu0 0.0
        %1046 = vmatpush1.msra.mxu0 0.0
        %1047 = vmatprep.subr.mxu0 0.0
        %1048 = vmatpush1.msra.mxu0 0.0
        %1049 = vmatprep.subr.mxu0 0.0
        %1050 = vmatpush1.msra.mxu0 %v787
        %1051 = vmatprep.subr.mxu0 0.0
        %1052 = vmatpush2.msra.mxu0 0.0
        %1053 = vmatprep.subr.mxu0 0.0
        %1054 = vmatpush2.msra.mxu0 0.0
        %1055 = vmatprep.subr.mxu0 0.0
        %1056 = vmatpush2.msra.mxu0 0.0
        %1057 = vmatprep.subr.mxu0 0.0
        %1058 = vmatpush2.msra.mxu0 0.0
        %1059 = vmatprep.subr.mxu0 0.0
        %1060 = vmatpush2.msra.mxu0 0.0
        %1061 = vmatprep.subr.mxu0 0.0
        %1062 = vmatpush2.msra.mxu0 0.0
        %1063 = vmatprep.subr.mxu0 0.0
        %1064 = vmatpush2.msra.mxu0 0.0
        %1065 = vmatprep.subr.mxu0 0.0
        %1066 = vmatpush2.msra.mxu0 0.0
        %1067 = vmatprep.subr.mxu0 0.0
        %1068 = vmatpush2.msra.mxu0 0.0
        %1069 = vmatprep.subr.mxu0 0.0
        %1070 = vmatpush2.msra.mxu0 0.0
        %1071 = vmatprep.subr.mxu0 0.0
        %1072 = vmatpush2.msra.mxu0 0.0
        %1073 = vmatprep.subr.mxu0 0.0
        %1074 = vmatpush2.msra.mxu0 0.0
        %1075 = vmatprep.subr.mxu0 0.0
        %1076 = vmatpush2.msra.mxu0 0.0
        %1077 = vmatprep.subr.mxu0 0.0
        %1078 = vmatpush2.msra.mxu0 0.0
        %1079 = vmatprep.subr.mxu0 0.0
        %1080 = vmatpush2.msra.mxu0 0.0
        %1081 = vmatprep.subr.mxu0 0.0
        %1082 = vmatpush2.msra.mxu0 0.0
        %1083 = vmatprep.mubr.f32.mxu0 0.0
        %1084 = vmatmul.mubr.f32.gmra.mxu0 %v1017
        %v1085 = vpop.f32.mrf.mxu0
        %v1086 = vadd.f32 0.0, %v1085
        %v1087 = vpop.f32.mrf.mxu0
        %1088 = vdwg.mxu0
        %v1089 = vadd.f32 %v1015, %v1086
        %v1090 = vsel %vm641, %v1089, 0.0
        %1091 = vadd.xlane.f32.xlu0 %v1090
        %v1092 = vpop.xlane.xlu0 %1091
        %v1093 = vrcp.pop 32.0
        %v1094 = vmul.f32 %v1092, %v1093
        %v1095 = vsub.f32 %v1089, %v1094
        %v1096 = vmul.f32 %v1095, %v1095
        %v1097 = vsel %vm641, %v1096, 0.0
        %1098 = vadd.xlane.f32.xlu0 %v1097
        %v1099 = vpop.xlane.xlu0 %1098
        %v1100 = vmul.f32 %v1099, %v1093
        %v1101 = vadd.f32 %v1100, 1e-05
        %v1102 = vrsqrt.pop %v1101
        %v1103 = vmul.f32 %v1095, %v1102
        %v1104 = vlaneseq
        %v1105 = vshrl.u32 %v1104, 7
        %v1106 = vsub.s32 2, %v1105
        %v1107 = vrot.slane %v783, %v1106
        %v1108 = vmul.f32 %v1103, %v1107
        %v1109 = vlaneseq
        %v1110 = vshrl.u32 %v1109, 7
        %v1111 = vsub.s32 3, %v1110
        %v1112 = vrot.slane %v783, %v1111
        %v1113 = vadd.f32 %v1108, %v1112
        %v1114 = vld [vmem:[%s3] sm:$0xff]
        %v1115 = vld [vmem:[%s3 + $0x8] sm:$0xff]
        %v1116 = vld [vmem:[%s3 + $0x10] sm:$0xff]
        %v1117 = vld [vmem:[%s3 + $0x18] sm:$0xff]
        %v1118 = vld [vmem:[%s3 + $0x20] sm:$0xff]
        %v1119 = vld [vmem:[%s3 + $0x28] sm:$0xff]
        %v1120 = vld [vmem:[%s3 + $0x30] sm:$0xff]
        %v1121 = vld [vmem:[%s3 + $0x38] sm:$0xff]
        %v1122 = vlaneseq
        %v1123 = vshrl.u32 %v1122, 7
        %v1124 = vsub.s32 0, %v1123
        %v1125 = vrot.slane %v783, %v1124
        %v1127 = vsel %vm641, %v1113, 0
        %1129 = vmatprep.subr.mxu0 0.0
        %1130 = vmatpush1.msra.mxu0 0.0
        %1131 = vmatprep.subr.mxu0 0.0
        %1132 = vmatpush1.msra.mxu0 0.0
        %1133 = vmatprep.subr.mxu0 0.0
        %1134 = vmatpush1.msra.mxu0 0.0
        %1135 = vmatprep.subr.mxu0 0.0
        %1136 = vmatpush1.msra.mxu0 0.0
        %1137 = vmatprep.subr.mxu0 0.0
        %1138 = vmatpush1.msra.mxu0 0.0
        %1139 = vmatprep.subr.mxu0 0.0
        %1140 = vmatpush1.msra.mxu0 0.0
        %1141 = vmatprep.subr.mxu0 0.0
        %1142 = vmatpush1.msra.mxu0 0.0
        %1143 = vmatprep.subr.mxu0 0.0
        %1144 = vmatpush1.msra.mxu0 0.0
        %1145 = vmatprep.subr.mxu0 0.0
        %1146 = vmatpush1.msra.mxu0 0.0
        %1147 = vmatprep.subr.mxu0 0.0
        %1148 = vmatpush1.msra.mxu0 0.0
        %1149 = vmatprep.subr.mxu0 0.0
        %1150 = vmatpush1.msra.mxu0 0.0
        %1151 = vmatprep.subr.mxu0 0.0
        %1152 = vmatpush1.msra.mxu0 0.0
        %1153 = vmatprep.subr.mxu0 0.0
        %1154 = vmatpush1.msra.mxu0 %v1117
        %1155 = vmatprep.subr.mxu0 0.0
        %1156 = vmatpush1.msra.mxu0 %v1116
        %1157 = vmatprep.subr.mxu0 0.0
        %1158 = vmatpush1.msra.mxu0 %v1115
        %1159 = vmatprep.subr.mxu0 0.0
        %1160 = vmatpush1.msra.mxu0 %v1114
        %1161 = vmatprep.subr.mxu0 0.0
        %1162 = vmatpush2.msra.mxu0 0.0
        %1163 = vmatprep.subr.mxu0 0.0
        %1164 = vmatpush2.msra.mxu0 0.0
        %1165 = vmatprep.subr.mxu0 0.0
        %1166 = vmatpush2.msra.mxu0 0.0
        %1167 = vmatprep.subr.mxu0 0.0
        %1168 = vmatpush2.msra.mxu0 0.0
        %1169 = vmatprep.subr.mxu0 0.0
        %1170 = vmatpush2.msra.mxu0 0.0
        %1171 = vmatprep.subr.mxu0 0.0
        %1172 = vmatpush2.msra.mxu0 0.0
        %1173 = vmatprep.subr.mxu0 0.0
        %1174 = vmatpush2.msra.mxu0 0.0
        %1175 = vmatprep.subr.mxu0 0.0
        %1176 = vmatpush2.msra.mxu0 0.0
        %1177 = vmatprep.subr.mxu0 0.0
        %1178 = vmatpush2.msra.mxu0 0.0
        %1179 = vmatprep.subr.mxu0 0.0
        %1180 = vmatpush2.msra.mxu0 0.0
        %1181 = vmatprep.subr.mxu0 0.0
        %1182 = vmatpush2.msra.mxu0 0.0
        %1183 = vmatprep.subr.mxu0 0.0
        %1184 = vmatpush2.msra.mxu0 0.0
        %1185 = vmatprep.subr.mxu0 0.0
        %1186 = vmatpush2.msra.mxu0 0.0
        %1187 = vmatprep.subr.mxu0 0.0
        %1188 = vmatpush2.msra.mxu0 0.0
        %1189 = vmatprep.subr.mxu0 0.0
        %1190 = vmatpush2.msra.mxu0 0.0
        %1191 = vmatprep.subr.mxu0 0.0
        %1192 = vmatpush2.msra.mxu0 0.0
        %1193 = vmatprep.mubr.f32.mxu0 0.0
        %1194 = vmatmul.mubr.f32.gmra.mxu0 %v1127
        %v1195 = vpop.f32.mrf.mxu0
        %v1196 = vadd.f32 %v1125, %v1195
        %v1197 = vpop.f32.mrf.mxu0
        %1198 = vdwg.mxu0
        %v1199 = vmax.f32 %v1196, 0.0
        %v1200 = vlaneseq
        %v1201 = vshrl.u32 %v1200, 7
        %v1202 = vsub.s32 4, %v1201
        %v1203 = vrot.slane %v783, %v1202
        %vm1204 = vcmask 523264
        %v1206 = vsel %vm1204, %v1199, 0
        %v1209 = vsel %vm1204, %v1118, 0
        %v1212 = vsel %vm1204, %v1119, 0
        %v1215 = vsel %vm1204, %v1120, 0
        %v1218 = vsel %vm1204, %v1121, 0
        %1220 = vmatprep.subr.mxu0 0.0
        %1221 = vmatpush1.xpose.msra.mxu0 0.0
        %1222 = vmatprep.subr.mxu0 0.0
        %1223 = vmatpush1.xpose.msra.mxu0 0.0
        %1224 = vmatprep.subr.mxu0 0.0
        %1225 = vmatpush1.xpose.msra.mxu0 0.0
        %1226 = vmatprep.subr.mxu0 0.0
        %1227 = vmatpush1.xpose.msra.mxu0 0.0
        %1228 = vmatprep.subr.mxu0 0.0
        %1229 = vmatpush1.xpose.msra.mxu0 0.0
        %1230 = vmatprep.subr.mxu0 0.0
        %1231 = vmatpush1.xpose.msra.mxu0 0.0
        %1232 = vmatprep.subr.mxu0 0.0
        %1233 = vmatpush1.xpose.msra.mxu0 0.0
        %1234 = vmatprep.subr.mxu0 0.0
        %1235 = vmatpush1.xpose.msra.mxu0 0.0
        %1236 = vmatprep.subr.mxu0 0.0
        %1237 = vmatpush1.xpose.msra.mxu0 0.0
        %1238 = vmatprep.subr.mxu0 0.0
        %1239 = vmatpush1.xpose.msra.mxu0 0.0
        %1240 = vmatprep.subr.mxu0 0.0
        %1241 = vmatpush1.xpose.msra.mxu0 0.0
        %1242 = vmatprep.subr.mxu0 0.0
        %1243 = vmatpush1.xpose.msra.mxu0 0.0
        %1244 = vmatprep.subr.mxu0 0.0
        %1245 = vmatpush1.xpose.msra.mxu0 %v1218
        %1246 = vmatprep.subr.mxu0 0.0
        %1247 = vmatpush1.xpose.msra.mxu0 %v1215
        %1248 = vmatprep.subr.mxu0 0.0
        %1249 = vmatpush1.xpose.msra.mxu0 %v1212
        %1250 = vmatprep.subr.mxu0 0.0
        %1251 = vmatpush1.xpose.msra.mxu0 %v1209
        %1252 = vmatprep.subr.mxu0 0.0
        %1253 = vmatpush2.xpose.msra.mxu0 0.0
        %1254 = vmatprep.subr.mxu0 0.0
        %1255 = vmatpush2.xpose.msra.mxu0 0.0
        %1256 = vmatprep.subr.mxu0 0.0
        %1257 = vmatpush2.xpose.msra.mxu0 0.0
        %1258 = vmatprep.subr.mxu0 0.0
        %1259 = vmatpush2.xpose.msra.mxu0 0.0
        %1260 = vmatprep.subr.mxu0 0.0
        %1261 = vmatpush2.xpose.msra.mxu0 0.0
        %1262 = vmatprep.subr.mxu0 0.0
        %1263 = vmatpush2.xpose.msra.mxu0 0.0
        %1264 = vmatprep.subr.mxu0 0.0
        %1265 = vmatpush2.xpose.msra.mxu0 0.0
        %1266 = vmatprep.subr.mxu0 0.0
        %1267 = vmatpush2.xpose.msra.mxu0 0.0
        %1268 = vmatprep.subr.mxu0 0.0
        %1269 = vmatpush2.xpose.msra.mxu0 0.0
        %1270 = vmatprep.subr.mxu0 0.0
        %1271 = vmatpush2.xpose.msra.mxu0 0.0
        %1272 = vmatprep.subr.mxu0 0.0
        %1273 = vmatpush2.xpose.msra.mxu0 0.0
        %1274 = vmatprep.subr.mxu0 0.0
        %1275 = vmatpush2.xpose.msra.mxu0 0.0
        %1276 = vmatprep.subr.mxu0 0.0
        %1277 = vmatpush2.xpose.msra.mxu0 0.0
        %1278 = vmatprep.subr.mxu0 0.0
        %1279 = vmatpush2.xpose.msra.mxu0 0.0
        %1280 = vmatprep.subr.mxu0 0.0
        %1281 = vmatpush2.xpose.msra.mxu0 0.0
        %1282 = vmatprep.subr.mxu0 0.0
        %1283 = vmatpush2.xpose.msra.mxu0 0.0
        %1284 = vmatprep.mubr.f32.mxu0 0.0
        %1285 = vmatmul.mubr.f32.gmra.mxu0 %v1206
        %v1286 = vpop.f32.mrf.mxu0
        %v1287 = vadd.f32 %v1203, %v1286
        %v1288 = vpop.f32.mrf.mxu0
        %1289 = vdwg.mxu0
        %v1290 = vadd.f32 %v1287, %v1113
        %v1291 = vsel %vm641, %v1290, 0.0
        %1292 = vadd.xlane.f32.xlu0 %v1291
        %v1293 = vpop.xlane.xlu0 %1292
        %v1294 = vmul.f32 %v1293, %v1093
        %v1295 = vsub.f32 %v1290, %v1294
        %v1296 = vmul.f32 %v1295, %v1295
        %v1297 = vsel %vm641, %v1296, 0.0
        %1298 = vadd.xlane.f32.xlu0 %v1297
        %v1299 = vpop.xlane.xlu0 %1298
        %v1300 = vmul.f32 %v1299, %v1093
        %v1301 = vadd.f32 %v1300, 1e-05
        %v1302 = vrsqrt.pop %v1301
        %v1303 = vmul.f32 %v1295, %v1302
        %v1304 = vlaneseq
        %v1305 = vshrl.u32 %v1304, 7
        %v1306 = vsub.s32 5, %v1305
        %v1307 = vrot.slane %v783, %v1306
        %v1308 = vmul.f32 %v1303, %v1307
        %v1309 = vlaneseq
        %v1310 = vshrl.u32 %v1309, 7
        %v1311 = vsub.s32 6, %v1310
        %v1312 = vrot.slane %v783, %v1311
        %v1313 = vadd.f32 %v1308, %v1312
        %1314 = vst.msk [vmem:[%s203] sm:$0xff] %vm641, %v1313
        %s1315 = sand.u32 %s120, 1
        %s1316 = scalar_lea.sflag [#allocation3], %s1315
        %s1317 = sand.u32 %s120, 1
        %s1318 = smul.addr %s1317, 8
        %s1319 = scalar_lea.vmem [#allocation2], %s1318
        // Predicated region
        $region37: #{transformer_block.1} parent=35 // pred_check
          %p1320 = pneg %p130
        $region38: #{transformer_block.1} parent=35 // pred_check_branch
          %1322 = sbr.rel (%p1320) target = $region40
        $region39: #{transformer_block.1} parent=35 // pred_region
          %s1324 = ssub.s32 128, 128
          %1325 = vsyncadd %s1316, %s1324
          %s1326 = smul.addr %s18, 128
          %s1327 = scalar_lea.hbm %s4, %s1326
          %s1329 = sshll.u32 %s1319, 4
          %s1330 = int_to_ptr.vmem [resolvable:$true] %s1329
          %1332 = dma.vmem_to_hbm [thread:$0]  %s1330, 128, %s1327, %s1316
        $region40: #{transformer_block.1} parent=35 // pred_fallthru
          _
      $region36: #{transformer_block.1} parent=5 // pred_fallthru
        _
      %p1333 = scmp.le.s32.totalorder 2, %s13
      // Predicated region
      $region41: #{transformer_block.1} parent=5 // pred_check
        %p1334 = pneg %p1333
      $region42: #{transformer_block.1} parent=5 // pred_check_branch
        %1336 = sbr.rel (%p1334) target = $region44
      $region43: #{transformer_block.1} parent=5 // pred_region
        %s1337 = ssub.s32 %s13, 2
        // Predicated region
        $region45: #{transformer_block.1} parent=43 // pred_check
          %p1338 = pneg %p136
        $region46: #{transformer_block.1} parent=43 // pred_check_branch
          %1340 = sbr.rel (%p1338) target = $region48
        $region47: #{transformer_block.1} parent=43 // pred_region
          %s1341 = sand.u32 %s121, 1
          %s1342 = scalar_lea.sflag [#allocation3], %s1341
          %s1343 = sand.u32 %s121, 1
          %s1344 = smul.addr %s1343, 8
          %s1345 = scalar_lea.vmem [#allocation2], %s1344
          %1346 = dma.done %s1342, 128
        $region48: #{transformer_block.1} parent=43 // pred_fallthru
          _
      $region44: #{transformer_block.1} parent=5 // pred_fallthru
        _
    $region6: #{transformer_block.1} parent=1 // loop_footer
      %s17 = sadd.s32 1, %s13
    $region7: #{transformer_block.1} parent=1 // loop_footer_branch
      %12 = sbr.rel target = $region3
    $region8: #{transformer_block.1} parent=1 // loop_exit
      _
    %1347 = vsyncpa [#allocation3], 1
    %s1348 = scalar_lea.sflag [#allocation3], 1
    %1349 = vsyncpa %s1348, 1

</llo_original>
